<compile_context>
chip_gen: v6e
topology: v6e:2x2x1
jax: 0.10.0
libtpu: 0.0.40
codegen_flags: <defaults>
</compile_context>

<pallas_src>
import functools

import jax
import jax.numpy as jnp
from jax.experimental import pallas as pl
from jax.experimental.pallas import tpu as pltpu

_MIB = 1024 * 1024


def _gelu_tanh(x):
    # PyTorch nn.GELU(approximate='tanh')
    c = jnp.float32(0.7978845608028654)  # sqrt(2/pi)
    return 0.5 * x * (1.0 + jnp.tanh(c * (x + 0.044715 * x * x * x)))


def _mlp_kernel(x_ref, wfc_ref, bfc_ref, wproj_ref, bproj_ref, o_ref,
                acc_ref=None, *, precision):
    # x_ref:     (tm, Cp)     wfc_ref:   (Cp, tk)   bfc_ref:   (1, tk)
    # wproj_ref: (tk, Cp)     bproj_ref: (1, Cp)    o_ref:     (tm, Cp)
    # acc_ref:   (tm, Cp) f32 scratch, or None when o_ref itself is f32 and can
    #            serve as the resident accumulator (its index_map is (i, 0)).
    k = pl.program_id(1)
    acc = o_ref if acc_ref is None else acc_ref

    @pl.when(k == 0)
    def _():
        acc[...] = jnp.zeros_like(acc)

    # First matmul + bias + GELU for this hidden tile (native-dtype MXU feed,
    # f32 accumulation; tanh goes to the EUP so it is effectively free).
    h = jnp.dot(x_ref[...], wfc_ref[...],
                preferred_element_type=jnp.float32, precision=precision)
    h = _gelu_tanh(h + bfc_ref[...].astype(jnp.float32))

    # Second matmul: accumulate this hidden tile's contribution to the output.
    acc[...] += jnp.dot(h.astype(wproj_ref.dtype), wproj_ref[...],
                        preferred_element_type=jnp.float32, precision=precision)

    @pl.when(k == pl.num_programs(1) - 1)
    def _():
        o_ref[...] = (acc[...]
                      + bproj_ref[...].astype(jnp.float32)).astype(o_ref.dtype)


def _round_up(x, m):
    return ((x + m - 1) // m) * m


def _tpu_generation():
    try:
        kind = jax.devices()[0].device_kind.lower()
    except Exception:
        return None
    if "v7" in kind or "7x" in kind:
        return "v7"
    if "v6" in kind or "6e" in kind or "6p" in kind:
        return "v6"
    if "v5" in kind or "5e" in kind or "5p" in kind:
        return "v5"
    return None


def _gen_defaults(gen):
    # (tm, tk, vmem_budget_bytes, vmem_limit_bytes)
    if gen == "v6":        # 128 MiB physical VMEM, ridge ~680 flop/B
        return 1024, 1024, 80 * _MIB, 96 * _MIB
    if gen == "v5":        # 128 MiB physical, but 16 MiB scoped default
        return 1024, 512, 64 * _MIB, 72 * _MIB
    if gen == "v7":        # 64 MiB physical VMEM, 3.2 TB/s HBM
        return 512, 512, 40 * _MIB, 48 * _MIB
    return 512, 512, 24 * _MIB, 32 * _MIB   # unknown chip: conservative


def _vmem_bytes(tm, tk, cp, x_bytes, w_bytes, o_bytes, scratch, wbuf):
    # Pipeline-allocated blocks (x/out double-buffered; weights wbuf-deep)
    # plus the optional f32 accumulator scratch and the biases.
    return (2 * tm * cp * x_bytes
            + wbuf * cp * tk * w_bytes
            + wbuf * tk * cp * w_bytes
            + 2 * tm * cp * o_bytes
            + (tm * cp * 4 if scratch else 0)
            + wbuf * (tk + cp) * 4)


def mlp_forward(x, w_fc, b_fc, w_proj, b_proj, *, tm=None, tk=None,
                vmem_budget_bytes=None, vmem_limit_bytes=None,
                weight_buffers=2):
    """x: [B, T, C]; w_fc: [4C, C]; b_fc: [4C]; w_proj: [C, 4C]; b_proj: [C].

    For inference pass bf16 weights: the wrapper then also feeds bf16
    activations (single-pass bf16 MXU, half the HBM traffic).  With f32 weights
    the matmuls request Precision.HIGHEST so results match the f32 reference.
    """
    B, T, C = x.shape
    H = w_fc.shape[0]          # 4C
    M = B * T
    out_dtype = x.dtype

    gen = _tpu_generation()
    d_tm, d_tk, d_budget, d_limit = _gen_defaults(gen)
    tm = d_tm if tm is None else tm
    tk = d_tk if tk is None else tk
    vmem_budget_bytes = d_budget if vmem_budget_bytes is None else vmem_budget_bytes
    vmem_limit_bytes = d_limit if vmem_limit_bytes is None else vmem_limit_bytes

    Cp = _round_up(C, 128)     # lane-dense padded width

    # Feed the MXU a single dtype: if the weights are narrower (e.g. bf16),
    # cast the activations too.
    in_dtype = x.dtype
    if jnp.dtype(w_fc.dtype).itemsize < jnp.dtype(x.dtype).itemsize:
        in_dtype = w_fc.dtype

    mxu_f32 = (jnp.dtype(in_dtype) == jnp.float32
               and jnp.dtype(w_fc.dtype) == jnp.float32)
    precision = jax.lax.Precision.HIGHEST if mxu_f32 else None

    # f32 output => accumulate directly into the resident output block.
    use_scratch = jnp.dtype(out_dtype) != jnp.float32

    x_bytes = jnp.dtype(in_dtype).itemsize
    w_bytes = jnp.dtype(w_fc.dtype).itemsize
    o_bytes = jnp.dtype(out_dtype).itemsize

    # Clamp tiles to the (padded) problem, then auto-shrink under the VMEM
    # budget with 256 floors (full 256x256 MXU tiles on v6e/v7x).
    tm = min(tm, _round_up(M, 8))
    tk = min(tk, _round_up(H, 128))
    tm_floor = min(256, _round_up(M, 8))
    tk_floor = min(256, _round_up(H, 128))
    while _vmem_bytes(tm, tk, Cp, x_bytes, w_bytes, o_bytes,
                      use_scratch, weight_buffers) > vmem_budget_bytes:
        if tk > tk_floor:
            tk = max(tk // 2, tk_floor)
        elif tm > tm_floor:
            tm = max(tm // 2, tm_floor)
        else:
            break

    # v7x: keep the row-tile count even so the "parallel" axis splits across
    # both TensorCores without a tail core sitting idle.
    if gen == "v7":
        n_i = -(-M // tm)
        if n_i > 1 and n_i % 2 == 1 and tm >= 512:
            tm //= 2

    Mp = _round_up(M, tm)
    Hp = _round_up(H, tk)

    # Zero-pad to tile-aligned, lane-dense shapes (exactness preserved).
    x2d = jnp.pad(x.reshape(M, C).astype(in_dtype), ((0, Mp - M), (0, Cp - C)))
    wfc_t = jnp.pad(w_fc.T, ((0, Cp - C), (0, Hp - H)))        # (Cp, Hp)
    wproj_t = jnp.pad(w_proj.T, ((0, Hp - H), (0, Cp - C)))    # (Hp, Cp)
    bfc2 = jnp.pad(b_fc, (0, Hp - H)).reshape(1, Hp)
    bproj2 = jnp.pad(b_proj, (0, Cp - C)).reshape(1, Cp)

    grid = (Mp // tm, Hp // tk)

    # Optional deeper buffering for the per-k weight streams (opt-in knob).
    if weight_buffers and weight_buffers != 2:
        wfc_spec = pl.BlockSpec((Cp, tk), lambda i, k: (0, k),
                                pipeline_mode=pl.Buffered(weight_buffers))
        wproj_spec = pl.BlockSpec((tk, Cp), lambda i, k: (k, 0),
                                  pipeline_mode=pl.Buffered(weight_buffers))
    else:
        wfc_spec = pl.BlockSpec((Cp, tk), lambda i, k: (0, k))
        wproj_spec = pl.BlockSpec((tk, Cp), lambda i, k: (k, 0))

    scratch_shapes = [pltpu.VMEM((tm, Cp), jnp.float32)] if use_scratch else []

    out2d = pl.pallas_call(
        functools.partial(_mlp_kernel, precision=precision),
        out_shape=jax.ShapeDtypeStruct((Mp, Cp), out_dtype),
        grid_spec=pltpu.PrefetchScalarGridSpec(
            num_scalar_prefetch=0,
            grid=grid,
            in_specs=[
                pl.BlockSpec((tm, Cp), lambda i, k: (i, 0)),   # x row tile
                wfc_spec,                                      # W_fc^T hidden tile
                pl.BlockSpec((1, tk), lambda i, k: (0, k)),    # b_fc hidden tile
                wproj_spec,                                    # W_proj^T hidden tile
                pl.BlockSpec((1, Cp), lambda i, k: (0, 0)),    # b_proj
            ],
            out_specs=pl.BlockSpec((tm, Cp), lambda i, k: (i, 0)),
            scratch_shapes=scratch_shapes,
        ),
        compiler_params=pltpu.CompilerParams(
            dimension_semantics=("parallel", "arbitrary"),
            vmem_limit_bytes=int(vmem_limit_bytes)),
    )(x2d, wfc_t, bfc2, wproj_t, bproj2)

    return out2d[:M, :C].reshape(B, T, C)


def _init_params(key, n_embd):
    # Deterministic synthetic init (PyTorch Linear-style uniform bounds).
    k1, k2, k3, k4 = jax.random.split(key, 4)
    hidden = 4 * n_embd
    bound_fc = 1.0 / (n_embd ** 0.5)
    bound_proj = 1.0 / (hidden ** 0.5)
    w_fc = jax.random.uniform(k1, (hidden, n_embd), jnp.float32,
                              -bound_fc, bound_fc)
    b_fc = jax.random.uniform(k2, (hidden,), jnp.float32,
                              -bound_fc, bound_fc)
    w_proj = jax.random.uniform(k3, (n_embd, hidden), jnp.float32,
                                -bound_proj, bound_proj)
    b_proj = jax.random.uniform(k4, (n_embd,), jnp.float32,
                                -bound_proj, bound_proj)
    return w_fc, b_fc, w_proj, b_proj


def _reference(x, w_fc, b_fc, w_proj, b_proj):
    h = jnp.einsum('btc,hc->bth', x, w_fc) + b_fc
    h = _gelu_tanh(h)
    return jnp.einsum('bth,ch->btc', h, w_proj) + b_proj


if __name__ == "__main__":
    B, T, C = 2, 8, 32          # batch=2, seq=8, n_embd=32 -> hidden=128
    key = jax.random.PRNGKey(0)
    kx, kp = jax.random.split(key)
    x = jax.random.normal(kx, (B, T, C), jnp.float32)
    w_fc, b_fc, w_proj, b_proj = _init_params(kp, C)

    # f32 path: exact MXU precision, accumulates directly into the output block.
    out = jax.block_until_ready(mlp_forward(x, w_fc, b_fc, w_proj, b_proj))
    ref = _reference(x, w_fc, b_fc, w_proj, b_proj)
    assert out.shape == (B, T, C)
    assert jnp.allclose(out, ref, atol=1e-4, rtol=1e-4), "f32 mismatch vs reference"

    # bf16 inference path: bf16 activations + weights, f32 accumulation + scratch.
    x_b = x.astype(jnp.bfloat16)
    wfc_b, bfc_b = w_fc.astype(jnp.bfloat16), b_fc.astype(jnp.bfloat16)
    wpj_b, bpj_b = w_proj.astype(jnp.bfloat16), b_proj.astype(jnp.bfloat16)
    out_b = jax.block_until_ready(mlp_forward(x_b, wfc_b, bfc_b, wpj_b, bpj_b))
    ref_b = _reference(x_b.astype(jnp.float32),
                       wfc_b.astype(jnp.float32), bfc_b.astype(jnp.float32),
                       wpj_b.astype(jnp.float32), bpj_b.astype(jnp.float32))
    assert out_b.shape == (B, T, C)
    assert jnp.allclose(out_b.astype(jnp.float32), ref_b, atol=3e-2, rtol=3e-2), \
        "bf16 mismatch vs reference"

    print("KERNEL_OK")
</pallas_src>

<mosaic_0001>
module attributes {stable_mosaic.version = 11 : i64} {
  func.func @_mlp_kernel(%arg0: i32, %arg1: i32, %arg2: memref<16x128xf32, #tpu.memory_space<vmem>>, %arg3: memref<128x128xf32, #tpu.memory_space<vmem>>, %arg4: memref<1x128xf32, #tpu.memory_space<vmem>>, %arg5: memref<128x128xf32, #tpu.memory_space<vmem>>, %arg6: memref<1x128xf32, #tpu.memory_space<vmem>>, %arg7: memref<16x128xf32, #tpu.memory_space<vmem>>) attributes {dimension_semantics = [#tpu.dimension_semantics<parallel>, #tpu.dimension_semantics<arbitrary>], iteration_bounds = array<i64: 1, 1>, scalar_prefetch = 0 : i64, scratch_operands = 0 : i64, tpu.core_type = #tpu.core_type<tc>, window_params = [{transform_indices = @transform_0, window_bounds = array<i64: 16, 128>}, {transform_indices = @transform_1, window_bounds = array<i64: 128, 128>}, {transform_indices = @transform_2, window_bounds = array<i64: 1, 128>}, {transform_indices = @transform_3, window_bounds = array<i64: 128, 128>}, {pipeline_mode = #tpu.pipeline_mode<synchronous>, transform_indices = @transform_4, window_bounds = array<i64: 1, 128>}, {transform_indices = @transform_5, window_bounds = array<i64: 16, 128>}]} {
    %c0_i32 = arith.constant 0 : i32
    %0 = arith.cmpi eq, %arg1, %c0_i32 : i32
    %1 = arith.extui %0 : i1 to i32
    %c0_i32_0 = arith.constant 0 : i32
    %2 = arith.cmpi ne, %1, %c0_i32_0 : i32
    scf.if %2 {
      %cst_19 = arith.constant 0.000000e+00 : f32
      %30 = vector.broadcast %cst_19 : f32 to vector<16x128xf32>
      %c0_20 = arith.constant 0 : index
      %c0_21 = arith.constant 0 : index
      %31 = vector.load %arg7[%c0_20, %c0_21] : memref<16x128xf32, #tpu.memory_space<vmem>>, vector<16x128xf32>
      tpu.vector_store %arg7[%c0_20, %c0_21], %30 {strides = array<i32>} : memref<16x128xf32, #tpu.memory_space<vmem>>, vector<16x128xf32>,
    } else {
    }
    %c0 = arith.constant 0 : index
    %c0_1 = arith.constant 0 : index
    %3 = vector.load %arg2[%c0, %c0_1] : memref<16x128xf32, #tpu.memory_space<vmem>>, vector<16x128xf32>
    %c0_2 = arith.constant 0 : index
    %c0_3 = arith.constant 0 : index
    %4 = vector.load %arg3[%c0_2, %c0_3] : memref<128x128xf32, #tpu.memory_space<vmem>>, vector<128x128xf32>
    %cst = arith.constant dense<0.000000e+00> : vector<16x128xf32>
    %5 = tpu.matmul %3, %4, %cst {dimension_numbers = #tpu.dot_dimension_numbers<[1], [0], [0], [1], [0, 0, 1, 1], [], []>, precision = #tpu.contract_precision<fp32>} : vector<16x128xf32>, vector<128x128xf32>, vector<16x128xf32> -> vector<16x128xf32>
    %c0_4 = arith.constant 0 : index
    %c0_5 = arith.constant 0 : index
    %6 = vector.load %arg4[%c0_4, %c0_5] : memref<1x128xf32, #tpu.memory_space<vmem>>, vector<1x128xf32>
    %7 = vector.broadcast %6 : vector<1x128xf32> to vector<16x128xf32>
    %8 = arith.addf %5, %7 : vector<16x128xf32>
    %cst_6 = arith.constant 5.000000e-01 : f32
    %9 = vector.broadcast %cst_6 : f32 to vector<16x128xf32>
    %10 = arith.mulf %9, %8 : vector<16x128xf32>
    %cst_7 = arith.constant 4.471500e-02 : f32
    %11 = vector.broadcast %cst_7 : f32 to vector<16x128xf32>
    %12 = arith.mulf %11, %8 : vector<16x128xf32>
    %13 = arith.mulf %12, %8 : vector<16x128xf32>
    %14 = arith.mulf %13, %8 : vector<16x128xf32>
    %15 = arith.addf %8, %14 : vector<16x128xf32>
    %cst_8 = arith.constant 0.797884583 : f32
    %16 = vector.broadcast %cst_8 : f32 to vector<16x128xf32>
    %17 = arith.mulf %16, %15 : vector<16x128xf32>
    %18 = math.tanh %17 : vector<16x128xf32>
    %cst_9 = arith.constant 1.000000e+00 : f32
    %19 = vector.broadcast %cst_9 : f32 to vector<16x128xf32>
    %20 = arith.addf %19, %18 : vector<16x128xf32>
    %21 = arith.mulf %10, %20 : vector<16x128xf32>
    %c0_10 = arith.constant 0 : index
    %c0_11 = arith.constant 0 : index
    %22 = vector.load %arg7[%c0_10, %c0_11] : memref<16x128xf32, #tpu.memory_space<vmem>>, vector<16x128xf32>
    %c0_12 = arith.constant 0 : index
    %c0_13 = arith.constant 0 : index
    %23 = vector.load %arg5[%c0_12, %c0_13] : memref<128x128xf32, #tpu.memory_space<vmem>>, vector<128x128xf32>
    %cst_14 = arith.constant dense<0.000000e+00> : vector<16x128xf32>
    %24 = tpu.matmul %21, %23, %cst_14 {dimension_numbers = #tpu.dot_dimension_numbers<[1], [0], [0], [1], [0, 0, 1, 1], [], []>, precision = #tpu.contract_precision<fp32>} : vector<16x128xf32>, vector<128x128xf32>, vector<16x128xf32> -> vector<16x128xf32>
    %25 = arith.addf %22, %24 : vector<16x128xf32>
    %c0_15 = arith.constant 0 : index
    %c0_16 = arith.constant 0 : index
    %26 = vector.load %arg7[%c0_15, %c0_16] : memref<16x128xf32, #tpu.memory_space<vmem>>, vector<16x128xf32>
    tpu.vector_store %arg7[%c0_15, %c0_16], %25 {strides = array<i32>} : memref<16x128xf32, #tpu.memory_space<vmem>>, vector<16x128xf32>,
    %c0_i32_17 = arith.constant 0 : i32
    %27 = arith.cmpi eq, %arg1, %c0_i32_17 : i32
    %28 = arith.extui %27 : i1 to i32
    %c0_i32_18 = arith.constant 0 : i32
    %29 = arith.cmpi ne, %28, %c0_i32_18 : i32
    scf.if %29 {
      %c0_19 = arith.constant 0 : index
      %c0_20 = arith.constant 0 : index
      %30 = vector.load %arg7[%c0_19, %c0_20] : memref<16x128xf32, #tpu.memory_space<vmem>>, vector<16x128xf32>
      %c0_21 = arith.constant 0 : index
      %c0_22 = arith.constant 0 : index
      %31 = vector.load %arg6[%c0_21, %c0_22] : memref<1x128xf32, #tpu.memory_space<vmem>>, vector<1x128xf32>
      %32 = vector.broadcast %31 : vector<1x128xf32> to vector<16x128xf32>
      %33 = arith.addf %30, %32 : vector<16x128xf32>
      %c0_23 = arith.constant 0 : index
      %c0_24 = arith.constant 0 : index
      %34 = vector.load %arg7[%c0_23, %c0_24] : memref<16x128xf32, #tpu.memory_space<vmem>>, vector<16x128xf32>
      tpu.vector_store %arg7[%c0_23, %c0_24], %33 {strides = array<i32>} : memref<16x128xf32, #tpu.memory_space<vmem>>, vector<16x128xf32>,
    } else {
    }
    return
  }
  func.func @transform_0(%arg0: i32, %arg1: i32) -> (i32, i32) {
    %c0_i32 = arith.constant 0 : i32
    %c0_i32_0 = arith.constant 0 : i32
    return %arg0, %c0_i32 : i32, i32
  }
  func.func @transform_1(%arg0: i32, %arg1: i32) -> (i32, i32) {
    %c0_i32 = arith.constant 0 : i32
    %c0_i32_0 = arith.constant 0 : i32
    return %c0_i32, %arg1 : i32, i32
  }
  func.func @transform_2(%arg0: i32, %arg1: i32) -> (i32, i32) {
    %c0_i32 = arith.constant 0 : i32
    %c0_i32_0 = arith.constant 0 : i32
    return %c0_i32, %arg1 : i32, i32
  }
  func.func @transform_3(%arg0: i32, %arg1: i32) -> (i32, i32) {
    %c0_i32 = arith.constant 0 : i32
    %c0_i32_0 = arith.constant 0 : i32
    return %arg1, %c0_i32 : i32, i32
  }
  func.func @transform_4(%arg0: i32, %arg1: i32) -> (i32, i32) {
    %c0_i32 = arith.constant 0 : i32
    %c0_i32_0 = arith.constant 0 : i32
    %c0_i32_1 = arith.constant 0 : i32
    return %c0_i32, %c0_i32_0 : i32, i32
  }
  func.func @transform_5(%arg0: i32, %arg1: i32) -> (i32, i32) {
    %c0_i32 = arith.constant 0 : i32
    %c0_i32_0 = arith.constant 0 : i32
    return %arg0, %c0_i32 : i32, i32
  }
}

</mosaic_0001>

<llo_original>
// kernel: tpu_custom_call.1
$region0: #{tpu_custom_call.1}
  #allocation0 [shape = 'u32[]', space=smem, size = 0x4, offset = 0x4, fixed_abs, tag = 'smem constant byte address 0x4 - core index']
  #allocation1 [shape = 'u32[144,128]{1,0:T(1,128)}', space=vmem, size = 0x12000, scoped, tag = 'internal scratch']
  %s0 = inlined_call_operand.hbm [shape: f32[16,128], index: 0, kind: input, shape index: {}]
  %s1 = inlined_call_operand.hbm [shape: f32[128,128], index: 1, kind: input, shape index: {}]
  %s2 = inlined_call_operand.vmem [shape: f32[1,128], index: 2, kind: input, shape index: {}]
  %s3 = inlined_call_operand.hbm [shape: f32[128,128], index: 3, kind: input, shape index: {}]
  %s4 = inlined_call_operand.vmem [shape: f32[1,128], index: 4, kind: input, shape index: {}]
  %s5 = inlined_call_operand.hbm [shape: f32[16,128], index: 5, kind: output, shape index: {}]
  %s6 = sld [smem:[#allocation0]]
  $region50: #{tpu_custom_call.1} parent=0
    _
  %s8 = ssub.s32 1, %s6
  %s9 = scalar_select 0, %s8, %s6
  $region1: #{tpu_custom_call.1} parent=0
    #allocation2 [shape = 'u8[8192]{0}', space=vmem, size = 0x2000, scoped, tag = 'input window, operand 0, single buffered']
    #allocation3 [shape = 's32[1]{0}', space=sflag, size = 0x4, scoped, tag = 'scoped memory for tpu_custom_call.1']
    #allocation4 [shape = 's32[1]{0}', space=sflag, size = 0x4, scoped, tag = 'scoped memory for tpu_custom_call.1']
    #allocation5 [shape = 'u8[65536]{0}', space=vmem, size = 0x10000, scoped, tag = 'input window, operand 1, single buffered']
    #allocation6 [shape = 's32[1]{0}', space=sflag, size = 0x4, scoped, tag = 'scoped memory for tpu_custom_call.1']
    #allocation7 [shape = 'u8[65536]{0}', space=vmem, size = 0x10000, scoped, tag = 'input window, operand 3, single buffered']
    #allocation8 [shape = 'u8[8192]{0}', space=vmem, size = 0x2000, scoped, tag = 'output window, operand 0, single buffered']
    %10 = vsyncpa [#allocation3], 0
    %11 = vsyncpa [#allocation6], 0
    %12 = vsyncpa [#allocation4], 0
    // Predicated region
    $region2: #{tpu_custom_call.1} parent=1 // pred_check
      _
    $region3: #{tpu_custom_call.1} parent=1 // pred_check_branch
      %14 = sbr.rel (0) target = $region5
    $region4: #{tpu_custom_call.1} parent=1 // pred_region
      %s16 = ssub.s32 256, 256
      %17 = vsyncadd [#allocation3], %s16
      %s18 = sshll.u32 [#allocation2], 4
      %s19 = int_to_ptr.vmem [resolvable:$true] %s18
      %24 = dma.hbm_to_vmem [thread:$0]  %s0, 256, %s19, [#allocation3], 128, 128, 8
    $region5: #{tpu_custom_call.1} parent=1 // pred_fallthru
      _
    // Predicated region
    $region6: #{tpu_custom_call.1} parent=1 // pred_check
      _
    $region7: #{tpu_custom_call.1} parent=1 // pred_check_branch
      %26 = sbr.rel (0) target = $region9
    $region8: #{tpu_custom_call.1} parent=1 // pred_region
      %s28 = ssub.s32 2048, 2048
      %29 = vsyncadd [#allocation6], %s28
      %s30 = sshll.u32 [#allocation5], 4
      %s31 = int_to_ptr.vmem [resolvable:$true] %s30
      %36 = dma.hbm_to_vmem [thread:$0]  %s1, 2048, %s31, [#allocation6], 128, 128, 8
    $region9: #{tpu_custom_call.1} parent=1 // pred_fallthru
      _
    // Predicated region
    $region10: #{tpu_custom_call.1} parent=1 // pred_check
      _
    $region11: #{tpu_custom_call.1} parent=1 // pred_check_branch
      %38 = sbr.rel (0) target = $region13
    $region12: #{tpu_custom_call.1} parent=1 // pred_region
      _
    $region13: #{tpu_custom_call.1} parent=1 // pred_fallthru
      _
    // Predicated region
    $region14: #{tpu_custom_call.1} parent=1 // pred_check
      _
    $region15: #{tpu_custom_call.1} parent=1 // pred_check_branch
      %40 = sbr.rel (0) target = $region17
    $region16: #{tpu_custom_call.1} parent=1 // pred_region
      %s42 = ssub.s32 2048, 2048
      %43 = vsyncadd [#allocation6], %s42
      %s44 = sshll.u32 [#allocation7], 4
      %s45 = int_to_ptr.vmem [resolvable:$true] %s44
      %50 = dma.hbm_to_vmem [thread:$0]  %s3, 2048, %s45, [#allocation6], 128, 128, 8
    $region17: #{tpu_custom_call.1} parent=1 // pred_fallthru
      _
    // Predicated region
    $region18: #{tpu_custom_call.1} parent=1 // pred_check
      _
    $region19: #{tpu_custom_call.1} parent=1 // pred_check_branch
      %52 = sbr.rel (0) target = $region21
    $region20: #{tpu_custom_call.1} parent=1 // pred_region
      _
    $region21: #{tpu_custom_call.1} parent=1 // pred_fallthru
      _
    // Predicated region
    $region22: #{tpu_custom_call.1} parent=1 // pred_check
      _
    $region23: #{tpu_custom_call.1} parent=1 // pred_check_branch
      %54 = sbr.rel (0) target = $region25
    $region24: #{tpu_custom_call.1} parent=1 // pred_region
      %55 = dma.done [#allocation3], 256
    $region25: #{tpu_custom_call.1} parent=1 // pred_fallthru
      _
    // Predicated region
    $region26: #{tpu_custom_call.1} parent=1 // pred_check
      _
    $region27: #{tpu_custom_call.1} parent=1 // pred_check_branch
      %57 = sbr.rel (0) target = $region29
    $region28: #{tpu_custom_call.1} parent=1 // pred_region
      %58 = dma.done [#allocation6], 2048
    $region29: #{tpu_custom_call.1} parent=1 // pred_fallthru
      _
    // Predicated region
    $region30: #{tpu_custom_call.1} parent=1 // pred_check
      _
    $region31: #{tpu_custom_call.1} parent=1 // pred_check_branch
      %60 = sbr.rel (0) target = $region33
    $region32: #{tpu_custom_call.1} parent=1 // pred_region
      %61 = dma.done [#allocation6], 2048
    $region33: #{tpu_custom_call.1} parent=1 // pred_fallthru
      _
    %p62 = scmp.eq.s32.totalorder 0, 0
    // Predicated region
    $region34: #{tpu_custom_call.1} parent=1 // pred_check
      %p63 = pneg %p62
    $region35: #{tpu_custom_call.1} parent=1 // pred_check_branch
      %65 = sbr.rel (%p63) target = $region37
    $region36: #{tpu_custom_call.1} parent=1 // pred_region
      %66 = vst [vmem:[#allocation8] sm:$0xff] 0.0
      %67 = vst [vmem:[#allocation8 + $0x8] sm:$0xff] 0.0
    $region37: #{tpu_custom_call.1} parent=1 // pred_fallthru
      _
    %v68 = vld [vmem:[#allocation2] sm:$0xff]
    %v69 = vld [vmem:[#allocation2 + $0x8] sm:$0xff]
    %v70 = vld [vmem:[#allocation5] sm:$0xff]
    %v71 = vld [vmem:[#allocation5 + $0x8] sm:$0xff]
    %v72 = vld [vmem:[#allocation5 + $0x10] sm:$0xff]
    %v73 = vld [vmem:[#allocation5 + $0x18] sm:$0xff]
    %v74 = vld [vmem:[#allocation5 + $0x20] sm:$0xff]
    %v75 = vld [vmem:[#allocation5 + $0x28] sm:$0xff]
    %v76 = vld [vmem:[#allocation5 + $0x30] sm:$0xff]
    %v77 = vld [vmem:[#allocation5 + $0x38] sm:$0xff]
    %v78 = vld [vmem:[#allocation5 + $0x40] sm:$0xff]
    %v79 = vld [vmem:[#allocation5 + $0x48] sm:$0xff]
    %v80 = vld [vmem:[#allocation5 + $0x50] sm:$0xff]
    %v81 = vld [vmem:[#allocation5 + $0x58] sm:$0xff]
    %v82 = vld [vmem:[#allocation5 + $0x60] sm:$0xff]
    %v83 = vld [vmem:[#allocation5 + $0x68] sm:$0xff]
    %v84 = vld [vmem:[#allocation5 + $0x70] sm:$0xff]
    %v85 = vld [vmem:[#allocation5 + $0x78] sm:$0xff]
    %v86 = vld [vmem:[%s2] sm:$0x1]
    %v88 = vlaneseq
    %v89 = vshrl.u32 %v88, 7
    %v90 = vsub.s32 0, %v89
    %v91 = vrot.slane %v86, %v90
    %93 = vmatprep.subr.mxu0 0.0
    %v94 = vand.u32 %v85, 4294901760
    %95 = vmatpush1.msra.mxu0 %v94
    %96 = vmatprep.subr.mxu0 0.0
    %v97 = vand.u32 %v84, 4294901760
    %98 = vmatpush1.msra.mxu0 %v97
    %99 = vmatprep.subr.mxu0 0.0
    %v100 = vand.u32 %v83, 4294901760
    %101 = vmatpush1.msra.mxu0 %v100
    %102 = vmatprep.subr.mxu0 0.0
    %v103 = vand.u32 %v82, 4294901760
    %104 = vmatpush1.msra.mxu0 %v103
    %105 = vmatprep.subr.mxu0 0.0
    %v106 = vand.u32 %v81, 4294901760
    %107 = vmatpush1.msra.mxu0 %v106
    %108 = vmatprep.subr.mxu0 0.0
    %v109 = vand.u32 %v80, 4294901760
    %110 = vmatpush1.msra.mxu0 %v109
    %111 = vmatprep.subr.mxu0 0.0
    %v112 = vand.u32 %v79, 4294901760
    %113 = vmatpush1.msra.mxu0 %v112
    %114 = vmatprep.subr.mxu0 0.0
    %v115 = vand.u32 %v78, 4294901760
    %116 = vmatpush1.msra.mxu0 %v115
    %117 = vmatprep.subr.mxu0 0.0
    %v118 = vand.u32 %v77, 4294901760
    %119 = vmatpush1.msra.mxu0 %v118
    %120 = vmatprep.subr.mxu0 0.0
    %v121 = vand.u32 %v76, 4294901760
    %122 = vmatpush1.msra.mxu0 %v121
    %123 = vmatprep.subr.mxu0 0.0
    %v124 = vand.u32 %v75, 4294901760
    %125 = vmatpush1.msra.mxu0 %v124
    %126 = vmatprep.subr.mxu0 0.0
    %v127 = vand.u32 %v74, 4294901760
    %128 = vmatpush1.msra.mxu0 %v127
    %129 = vmatprep.subr.mxu0 0.0
    %v130 = vand.u32 %v73, 4294901760
    %131 = vmatpush1.msra.mxu0 %v130
    %132 = vmatprep.subr.mxu0 0.0
    %v133 = vand.u32 %v72, 4294901760
    %134 = vmatpush1.msra.mxu0 %v133
    %135 = vmatprep.subr.mxu0 0.0
    %v136 = vand.u32 %v71, 4294901760
    %137 = vmatpush1.msra.mxu0 %v136
    %138 = vmatprep.subr.mxu0 0.0
    %v139 = vand.u32 %v70, 4294901760
    %140 = vmatpush1.msra.mxu0 %v139
    %141 = vmatprep.subr.mxu0 0.0
    %142 = vmatpush2.msra.mxu0 0.0
    %143 = vmatprep.subr.mxu0 0.0
    %144 = vmatpush2.msra.mxu0 0.0
    %145 = vmatprep.subr.mxu0 0.0
    %146 = vmatpush2.msra.mxu0 0.0
    %147 = vmatprep.subr.mxu0 0.0
    %148 = vmatpush2.msra.mxu0 0.0
    %149 = vmatprep.subr.mxu0 0.0
    %150 = vmatpush2.msra.mxu0 0.0
    %151 = vmatprep.subr.mxu0 0.0
    %152 = vmatpush2.msra.mxu0 0.0
    %153 = vmatprep.subr.mxu0 0.0
    %154 = vmatpush2.msra.mxu0 0.0
    %155 = vmatprep.subr.mxu0 0.0
    %156 = vmatpush2.msra.mxu0 0.0
    %157 = vmatprep.subr.mxu0 0.0
    %158 = vmatpush2.msra.mxu0 0.0
    %159 = vmatprep.subr.mxu0 0.0
    %160 = vmatpush2.msra.mxu0 0.0
    %161 = vmatprep.subr.mxu0 0.0
    %162 = vmatpush2.msra.mxu0 0.0
    %163 = vmatprep.subr.mxu0 0.0
    %164 = vmatpush2.msra.mxu0 0.0
    %165 = vmatprep.subr.mxu0 0.0
    %166 = vmatpush2.msra.mxu0 0.0
    %167 = vmatprep.subr.mxu0 0.0
    %168 = vmatpush2.msra.mxu0 0.0
    %169 = vmatprep.subr.mxu0 0.0
    %170 = vmatpush2.msra.mxu0 0.0
    %171 = vmatprep.subr.mxu0 0.0
    %172 = vmatpush2.msra.mxu0 0.0
    %173 = vmatprep.mubr.f32.mxu0 0.0
    %v174 = vand.u32 %v68, 4294901760
    %v175 = vsub.f32 %v68, %v174
    %v176 = vand.u32 %v175, 4294901760
    %v177 = vsub.f32 %v175, %v176
    %v178 = vand.u32 %v177, 4294901760
    %179 = vmatmul.mubr.f32.gmra.mxu0 %v178
    %v180 = vpop.f32.mrf.mxu0
    %v181 = vadd.f32 %v91, %v180
    %v182 = vpop.f32.mrf.mxu0
    %183 = vmatprep.mubr.f32.mxu0 0.0
    %v184 = vand.u32 %v69, 4294901760
    %v185 = vsub.f32 %v69, %v184
    %v186 = vand.u32 %v185, 4294901760
    %v187 = vsub.f32 %v185, %v186
    %v188 = vand.u32 %v187, 4294901760
    %189 = vmatmul.mubr.f32.gmra.mxu0 %v188
    %v190 = vpop.f32.mrf.mxu0
    %v191 = vadd.f32 %v91, %v190
    %v192 = vpop.f32.mrf.mxu0
    %193 = vdwg.mxu0
    %194 = vmatprep.subr.mxu0 0.0
    %v195 = vand.u32 %v85, 4294901760
    %v196 = vsub.f32 %v85, %v195
    %v197 = vand.u32 %v196, 4294901760
    %v198 = vsub.f32 %v196, %v197
    %v199 = vand.u32 %v198, 4294901760
    %200 = vmatpush1.msra.mxu0 %v199
    %201 = vmatprep.subr.mxu0 0.0
    %v202 = vand.u32 %v84, 4294901760
    %v203 = vsub.f32 %v84, %v202
    %v204 = vand.u32 %v203, 4294901760
    %v205 = vsub.f32 %v203, %v204
    %v206 = vand.u32 %v205, 4294901760
    %207 = vmatpush1.msra.mxu0 %v206
    %208 = vmatprep.subr.mxu0 0.0
    %v209 = vand.u32 %v83, 4294901760
    %v210 = vsub.f32 %v83, %v209
    %v211 = vand.u32 %v210, 4294901760
    %v212 = vsub.f32 %v210, %v211
    %v213 = vand.u32 %v212, 4294901760
    %214 = vmatpush1.msra.mxu0 %v213
    %215 = vmatprep.subr.mxu0 0.0
    %v216 = vand.u32 %v82, 4294901760
    %v217 = vsub.f32 %v82, %v216
    %v218 = vand.u32 %v217, 4294901760
    %v219 = vsub.f32 %v217, %v218
    %v220 = vand.u32 %v219, 4294901760
    %221 = vmatpush1.msra.mxu0 %v220
    %222 = vmatprep.subr.mxu0 0.0
    %v223 = vand.u32 %v81, 4294901760
    %v224 = vsub.f32 %v81, %v223
    %v225 = vand.u32 %v224, 4294901760
    %v226 = vsub.f32 %v224, %v225
    %v227 = vand.u32 %v226, 4294901760
    %228 = vmatpush1.msra.mxu0 %v227
    %229 = vmatprep.subr.mxu0 0.0
    %v230 = vand.u32 %v80, 4294901760
    %v231 = vsub.f32 %v80, %v230
    %v232 = vand.u32 %v231, 4294901760
    %v233 = vsub.f32 %v231, %v232
    %v234 = vand.u32 %v233, 4294901760
    %235 = vmatpush1.msra.mxu0 %v234
    %236 = vmatprep.subr.mxu0 0.0
    %v237 = vand.u32 %v79, 4294901760
    %v238 = vsub.f32 %v79, %v237
    %v239 = vand.u32 %v238, 4294901760
    %v240 = vsub.f32 %v238, %v239
    %v241 = vand.u32 %v240, 4294901760
    %242 = vmatpush1.msra.mxu0 %v241
    %243 = vmatprep.subr.mxu0 0.0
    %v244 = vand.u32 %v78, 4294901760
    %v245 = vsub.f32 %v78, %v244
    %v246 = vand.u32 %v245, 4294901760
    %v247 = vsub.f32 %v245, %v246
    %v248 = vand.u32 %v247, 4294901760
    %249 = vmatpush1.msra.mxu0 %v248
    %250 = vmatprep.subr.mxu0 0.0
    %v251 = vand.u32 %v77, 4294901760
    %v252 = vsub.f32 %v77, %v251
    %v253 = vand.u32 %v252, 4294901760
    %v254 = vsub.f32 %v252, %v253
    %v255 = vand.u32 %v254, 4294901760
    %256 = vmatpush1.msra.mxu0 %v255
    %257 = vmatprep.subr.mxu0 0.0
    %v258 = vand.u32 %v76, 4294901760
    %v259 = vsub.f32 %v76, %v258
    %v260 = vand.u32 %v259, 4294901760
    %v261 = vsub.f32 %v259, %v260
    %v262 = vand.u32 %v261, 4294901760
    %263 = vmatpush1.msra.mxu0 %v262
    %264 = vmatprep.subr.mxu0 0.0
    %v265 = vand.u32 %v75, 4294901760
    %v266 = vsub.f32 %v75, %v265
    %v267 = vand.u32 %v266, 4294901760
    %v268 = vsub.f32 %v266, %v267
    %v269 = vand.u32 %v268, 4294901760
    %270 = vmatpush1.msra.mxu0 %v269
    %271 = vmatprep.subr.mxu0 0.0
    %v272 = vand.u32 %v74, 4294901760
    %v273 = vsub.f32 %v74, %v272
    %v274 = vand.u32 %v273, 4294901760
    %v275 = vsub.f32 %v273, %v274
    %v276 = vand.u32 %v275, 4294901760
    %277 = vmatpush1.msra.mxu0 %v276
    %278 = vmatprep.subr.mxu0 0.0
    %v279 = vand.u32 %v73, 4294901760
    %v280 = vsub.f32 %v73, %v279
    %v281 = vand.u32 %v280, 4294901760
    %v282 = vsub.f32 %v280, %v281
    %v283 = vand.u32 %v282, 4294901760
    %284 = vmatpush1.msra.mxu0 %v283
    %285 = vmatprep.subr.mxu0 0.0
    %v286 = vand.u32 %v72, 4294901760
    %v287 = vsub.f32 %v72, %v286
    %v288 = vand.u32 %v287, 4294901760
    %v289 = vsub.f32 %v287, %v288
    %v290 = vand.u32 %v289, 4294901760
    %291 = vmatpush1.msra.mxu0 %v290
    %292 = vmatprep.subr.mxu0 0.0
    %v293 = vand.u32 %v71, 4294901760
    %v294 = vsub.f32 %v71, %v293
    %v295 = vand.u32 %v294, 4294901760
    %v296 = vsub.f32 %v294, %v295
    %v297 = vand.u32 %v296, 4294901760
    %298 = vmatpush1.msra.mxu0 %v297
    %299 = vmatprep.subr.mxu0 0.0
    %v300 = vand.u32 %v70, 4294901760
    %v301 = vsub.f32 %v70, %v300
    %v302 = vand.u32 %v301, 4294901760
    %v303 = vsub.f32 %v301, %v302
    %v304 = vand.u32 %v303, 4294901760
    %305 = vmatpush1.msra.mxu0 %v304
    %306 = vmatprep.subr.mxu0 0.0
    %307 = vmatpush2.msra.mxu0 0.0
    %308 = vmatprep.subr.mxu0 0.0
    %309 = vmatpush2.msra.mxu0 0.0
    %310 = vmatprep.subr.mxu0 0.0
    %311 = vmatpush2.msra.mxu0 0.0
    %312 = vmatprep.subr.mxu0 0.0
    %313 = vmatpush2.msra.mxu0 0.0
    %314 = vmatprep.subr.mxu0 0.0
    %315 = vmatpush2.msra.mxu0 0.0
    %316 = vmatprep.subr.mxu0 0.0
    %317 = vmatpush2.msra.mxu0 0.0
    %318 = vmatprep.subr.mxu0 0.0
    %319 = vmatpush2.msra.mxu0 0.0
    %320 = vmatprep.subr.mxu0 0.0
    %321 = vmatpush2.msra.mxu0 0.0
    %322 = vmatprep.subr.mxu0 0.0
    %323 = vmatpush2.msra.mxu0 0.0
    %324 = vmatprep.subr.mxu0 0.0
    %325 = vmatpush2.msra.mxu0 0.0
    %326 = vmatprep.subr.mxu0 0.0
    %327 = vmatpush2.msra.mxu0 0.0
    %328 = vmatprep.subr.mxu0 0.0
    %329 = vmatpush2.msra.mxu0 0.0
    %330 = vmatprep.subr.mxu0 0.0
    %331 = vmatpush2.msra.mxu0 0.0
    %332 = vmatprep.subr.mxu0 0.0
    %333 = vmatpush2.msra.mxu0 0.0
    %334 = vmatprep.subr.mxu0 0.0
    %335 = vmatpush2.msra.mxu0 0.0
    %336 = vmatprep.subr.mxu0 0.0
    %337 = vmatpush2.msra.mxu0 0.0
    %338 = vmatprep.mubr.f32.mxu0 0.0
    %v339 = vand.u32 %v68, 4294901760
    %340 = vmatmul.mubr.f32.gmra.mxu0 %v339
    %v341 = vpop.f32.mrf.mxu0
    %v342 = vadd.f32 %v181, %v341
    %v343 = vpop.f32.mrf.mxu0
    %344 = vmatprep.mubr.f32.mxu0 0.0
    %v345 = vand.u32 %v69, 4294901760
    %346 = vmatmul.mubr.f32.gmra.mxu0 %v345
    %v347 = vpop.f32.mrf.mxu0
    %v348 = vadd.f32 %v191, %v347
    %v349 = vpop.f32.mrf.mxu0
    %350 = vdwg.mxu0
    %351 = vmatprep.subr.mxu0 0.0
    %v352 = vand.u32 %v85, 4294901760
    %v353 = vsub.f32 %v85, %v352
    %354 = vmatpush1.msra.mxu0 %v353
    %355 = vmatprep.subr.mxu0 0.0
    %v356 = vand.u32 %v84, 4294901760
    %v357 = vsub.f32 %v84, %v356
    %358 = vmatpush1.msra.mxu0 %v357
    %359 = vmatprep.subr.mxu0 0.0
    %v360 = vand.u32 %v83, 4294901760
    %v361 = vsub.f32 %v83, %v360
    %362 = vmatpush1.msra.mxu0 %v361
    %363 = vmatprep.subr.mxu0 0.0
    %v364 = vand.u32 %v82, 4294901760
    %v365 = vsub.f32 %v82, %v364
    %366 = vmatpush1.msra.mxu0 %v365
    %367 = vmatprep.subr.mxu0 0.0
    %v368 = vand.u32 %v81, 4294901760
    %v369 = vsub.f32 %v81, %v368
    %370 = vmatpush1.msra.mxu0 %v369
    %371 = vmatprep.subr.mxu0 0.0
    %v372 = vand.u32 %v80, 4294901760
    %v373 = vsub.f32 %v80, %v372
    %374 = vmatpush1.msra.mxu0 %v373
    %375 = vmatprep.subr.mxu0 0.0
    %v376 = vand.u32 %v79, 4294901760
    %v377 = vsub.f32 %v79, %v376
    %378 = vmatpush1.msra.mxu0 %v377
    %379 = vmatprep.subr.mxu0 0.0
    %v380 = vand.u32 %v78, 4294901760
    %v381 = vsub.f32 %v78, %v380
    %382 = vmatpush1.msra.mxu0 %v381
    %383 = vmatprep.subr.mxu0 0.0
    %v384 = vand.u32 %v77, 4294901760
    %v385 = vsub.f32 %v77, %v384
    %386 = vmatpush1.msra.mxu0 %v385
    %387 = vmatprep.subr.mxu0 0.0
    %v388 = vand.u32 %v76, 4294901760
    %v389 = vsub.f32 %v76, %v388
    %390 = vmatpush1.msra.mxu0 %v389
    %391 = vmatprep.subr.mxu0 0.0
    %v392 = vand.u32 %v75, 4294901760
    %v393 = vsub.f32 %v75, %v392
    %394 = vmatpush1.msra.mxu0 %v393
    %395 = vmatprep.subr.mxu0 0.0
    %v396 = vand.u32 %v74, 4294901760
    %v397 = vsub.f32 %v74, %v396
    %398 = vmatpush1.msra.mxu0 %v397
    %399 = vmatprep.subr.mxu0 0.0
    %v400 = vand.u32 %v73, 4294901760
    %v401 = vsub.f32 %v73, %v400
    %402 = vmatpush1.msra.mxu0 %v401
    %403 = vmatprep.subr.mxu0 0.0
    %v404 = vand.u32 %v72, 4294901760
    %v405 = vsub.f32 %v72, %v404
    %406 = vmatpush1.msra.mxu0 %v405
    %407 = vmatprep.subr.mxu0 0.0
    %v408 = vand.u32 %v71, 4294901760
    %v409 = vsub.f32 %v71, %v408
    %410 = vmatpush1.msra.mxu0 %v409
    %411 = vmatprep.subr.mxu0 0.0
    %v412 = vand.u32 %v70, 4294901760
    %v413 = vsub.f32 %v70, %v412
    %414 = vmatpush1.msra.mxu0 %v413
    %415 = vmatprep.subr.mxu0 0.0
    %416 = vmatpush2.msra.mxu0 0.0
    %417 = vmatprep.subr.mxu0 0.0
    %418 = vmatpush2.msra.mxu0 0.0
    %419 = vmatprep.subr.mxu0 0.0
    %420 = vmatpush2.msra.mxu0 0.0
    %421 = vmatprep.subr.mxu0 0.0
    %422 = vmatpush2.msra.mxu0 0.0
    %423 = vmatprep.subr.mxu0 0.0
    %424 = vmatpush2.msra.mxu0 0.0
    %425 = vmatprep.subr.mxu0 0.0
    %426 = vmatpush2.msra.mxu0 0.0
    %427 = vmatprep.subr.mxu0 0.0
    %428 = vmatpush2.msra.mxu0 0.0
    %429 = vmatprep.subr.mxu0 0.0
    %430 = vmatpush2.msra.mxu0 0.0
    %431 = vmatprep.subr.mxu0 0.0
    %432 = vmatpush2.msra.mxu0 0.0
    %433 = vmatprep.subr.mxu0 0.0
    %434 = vmatpush2.msra.mxu0 0.0
    %435 = vmatprep.subr.mxu0 0.0
    %436 = vmatpush2.msra.mxu0 0.0
    %437 = vmatprep.subr.mxu0 0.0
    %438 = vmatpush2.msra.mxu0 0.0
    %439 = vmatprep.subr.mxu0 0.0
    %440 = vmatpush2.msra.mxu0 0.0
    %441 = vmatprep.subr.mxu0 0.0
    %442 = vmatpush2.msra.mxu0 0.0
    %443 = vmatprep.subr.mxu0 0.0
    %444 = vmatpush2.msra.mxu0 0.0
    %445 = vmatprep.subr.mxu0 0.0
    %446 = vmatpush2.msra.mxu0 0.0
    %447 = vmatprep.mubr.f32.mxu0 0.0
    %v448 = vand.u32 %v68, 4294901760
    %v449 = vsub.f32 %v68, %v448
    %450 = vmatmul.mubr.f32.gmra.mxu0 %v449
    %v451 = vpop.f32.mrf.mxu0
    %v452 = vadd.f32 %v342, %v451
    %v453 = vpop.f32.mrf.mxu0
    %454 = vmatprep.mubr.f32.mxu0 0.0
    %v455 = vand.u32 %v69, 4294901760
    %v456 = vsub.f32 %v69, %v455
    %457 = vmatmul.mubr.f32.gmra.mxu0 %v456
    %v458 = vpop.f32.mrf.mxu0
    %v459 = vadd.f32 %v348, %v458
    %v460 = vpop.f32.mrf.mxu0
    %461 = vdwg.mxu0
    %462 = vmatprep.subr.mxu0 0.0
    %v463 = vand.u32 %v85, 4294901760
    %464 = vmatpush1.msra.mxu0 %v463
    %465 = vmatprep.subr.mxu0 0.0
    %v466 = vand.u32 %v84, 4294901760
    %467 = vmatpush1.msra.mxu0 %v466
    %468 = vmatprep.subr.mxu0 0.0
    %v469 = vand.u32 %v83, 4294901760
    %470 = vmatpush1.msra.mxu0 %v469
    %471 = vmatprep.subr.mxu0 0.0
    %v472 = vand.u32 %v82, 4294901760
    %473 = vmatpush1.msra.mxu0 %v472
    %474 = vmatprep.subr.mxu0 0.0
    %v475 = vand.u32 %v81, 4294901760
    %476 = vmatpush1.msra.mxu0 %v475
    %477 = vmatprep.subr.mxu0 0.0
    %v478 = vand.u32 %v80, 4294901760
    %479 = vmatpush1.msra.mxu0 %v478
    %480 = vmatprep.subr.mxu0 0.0
    %v481 = vand.u32 %v79, 4294901760
    %482 = vmatpush1.msra.mxu0 %v481
    %483 = vmatprep.subr.mxu0 0.0
    %v484 = vand.u32 %v78, 4294901760
    %485 = vmatpush1.msra.mxu0 %v484
    %486 = vmatprep.subr.mxu0 0.0
    %v487 = vand.u32 %v77, 4294901760
    %488 = vmatpush1.msra.mxu0 %v487
    %489 = vmatprep.subr.mxu0 0.0
    %v490 = vand.u32 %v76, 4294901760
    %491 = vmatpush1.msra.mxu0 %v490
    %492 = vmatprep.subr.mxu0 0.0
    %v493 = vand.u32 %v75, 4294901760
    %494 = vmatpush1.msra.mxu0 %v493
    %495 = vmatprep.subr.mxu0 0.0
    %v496 = vand.u32 %v74, 4294901760
    %497 = vmatpush1.msra.mxu0 %v496
    %498 = vmatprep.subr.mxu0 0.0
    %v499 = vand.u32 %v73, 4294901760
    %500 = vmatpush1.msra.mxu0 %v499
    %501 = vmatprep.subr.mxu0 0.0
    %v502 = vand.u32 %v72, 4294901760
    %503 = vmatpush1.msra.mxu0 %v502
    %504 = vmatprep.subr.mxu0 0.0
    %v505 = vand.u32 %v71, 4294901760
    %506 = vmatpush1.msra.mxu0 %v505
    %507 = vmatprep.subr.mxu0 0.0
    %v508 = vand.u32 %v70, 4294901760
    %509 = vmatpush1.msra.mxu0 %v508
    %510 = vmatprep.subr.mxu0 0.0
    %511 = vmatpush2.msra.mxu0 0.0
    %512 = vmatprep.subr.mxu0 0.0
    %513 = vmatpush2.msra.mxu0 0.0
    %514 = vmatprep.subr.mxu0 0.0
    %515 = vmatpush2.msra.mxu0 0.0
    %516 = vmatprep.subr.mxu0 0.0
    %517 = vmatpush2.msra.mxu0 0.0
    %518 = vmatprep.subr.mxu0 0.0
    %519 = vmatpush2.msra.mxu0 0.0
    %520 = vmatprep.subr.mxu0 0.0
    %521 = vmatpush2.msra.mxu0 0.0
    %522 = vmatprep.subr.mxu0 0.0
    %523 = vmatpush2.msra.mxu0 0.0
    %524 = vmatprep.subr.mxu0 0.0
    %525 = vmatpush2.msra.mxu0 0.0
    %526 = vmatprep.subr.mxu0 0.0
    %527 = vmatpush2.msra.mxu0 0.0
    %528 = vmatprep.subr.mxu0 0.0
    %529 = vmatpush2.msra.mxu0 0.0
    %530 = vmatprep.subr.mxu0 0.0
    %531 = vmatpush2.msra.mxu0 0.0
    %532 = vmatprep.subr.mxu0 0.0
    %533 = vmatpush2.msra.mxu0 0.0
    %534 = vmatprep.subr.mxu0 0.0
    %535 = vmatpush2.msra.mxu0 0.0
    %536 = vmatprep.subr.mxu0 0.0
    %537 = vmatpush2.msra.mxu0 0.0
    %538 = vmatprep.subr.mxu0 0.0
    %539 = vmatpush2.msra.mxu0 0.0
    %540 = vmatprep.subr.mxu0 0.0
    %541 = vmatpush2.msra.mxu0 0.0
    %542 = vmatprep.mubr.f32.mxu0 0.0
    %v543 = vand.u32 %v68, 4294901760
    %v544 = vsub.f32 %v68, %v543
    %v545 = vand.u32 %v544, 4294901760
    %546 = vmatmul.mubr.f32.gmra.mxu0 %v545
    %v547 = vpop.f32.mrf.mxu0
    %v548 = vadd.f32 %v452, %v547
    %v549 = vpop.f32.mrf.mxu0
    %550 = vmatprep.mubr.f32.mxu0 0.0
    %v551 = vand.u32 %v69, 4294901760
    %v552 = vsub.f32 %v69, %v551
    %v553 = vand.u32 %v552, 4294901760
    %554 = vmatmul.mubr.f32.gmra.mxu0 %v553
    %v555 = vpop.f32.mrf.mxu0
    %v556 = vadd.f32 %v459, %v555
    %v557 = vpop.f32.mrf.mxu0
    %558 = vdwg.mxu0
    %559 = vmatprep.subr.mxu0 0.0
    %v560 = vand.u32 %v85, 4294901760
    %v561 = vsub.f32 %v85, %v560
    %v562 = vand.u32 %v561, 4294901760
    %563 = vmatpush1.msra.mxu0 %v562
    %564 = vmatprep.subr.mxu0 0.0
    %v565 = vand.u32 %v84, 4294901760
    %v566 = vsub.f32 %v84, %v565
    %v567 = vand.u32 %v566, 4294901760
    %568 = vmatpush1.msra.mxu0 %v567
    %569 = vmatprep.subr.mxu0 0.0
    %v570 = vand.u32 %v83, 4294901760
    %v571 = vsub.f32 %v83, %v570
    %v572 = vand.u32 %v571, 4294901760
    %573 = vmatpush1.msra.mxu0 %v572
    %574 = vmatprep.subr.mxu0 0.0
    %v575 = vand.u32 %v82, 4294901760
    %v576 = vsub.f32 %v82, %v575
    %v577 = vand.u32 %v576, 4294901760
    %578 = vmatpush1.msra.mxu0 %v577
    %579 = vmatprep.subr.mxu0 0.0
    %v580 = vand.u32 %v81, 4294901760
    %v581 = vsub.f32 %v81, %v580
    %v582 = vand.u32 %v581, 4294901760
    %583 = vmatpush1.msra.mxu0 %v582
    %584 = vmatprep.subr.mxu0 0.0
    %v585 = vand.u32 %v80, 4294901760
    %v586 = vsub.f32 %v80, %v585
    %v587 = vand.u32 %v586, 4294901760
    %588 = vmatpush1.msra.mxu0 %v587
    %589 = vmatprep.subr.mxu0 0.0
    %v590 = vand.u32 %v79, 4294901760
    %v591 = vsub.f32 %v79, %v590
    %v592 = vand.u32 %v591, 4294901760
    %593 = vmatpush1.msra.mxu0 %v592
    %594 = vmatprep.subr.mxu0 0.0
    %v595 = vand.u32 %v78, 4294901760
    %v596 = vsub.f32 %v78, %v595
    %v597 = vand.u32 %v596, 4294901760
    %598 = vmatpush1.msra.mxu0 %v597
    %599 = vmatprep.subr.mxu0 0.0
    %v600 = vand.u32 %v77, 4294901760
    %v601 = vsub.f32 %v77, %v600
    %v602 = vand.u32 %v601, 4294901760
    %603 = vmatpush1.msra.mxu0 %v602
    %604 = vmatprep.subr.mxu0 0.0
    %v605 = vand.u32 %v76, 4294901760
    %v606 = vsub.f32 %v76, %v605
    %v607 = vand.u32 %v606, 4294901760
    %608 = vmatpush1.msra.mxu0 %v607
    %609 = vmatprep.subr.mxu0 0.0
    %v610 = vand.u32 %v75, 4294901760
    %v611 = vsub.f32 %v75, %v610
    %v612 = vand.u32 %v611, 4294901760
    %613 = vmatpush1.msra.mxu0 %v612
    %614 = vmatprep.subr.mxu0 0.0
    %v615 = vand.u32 %v74, 4294901760
    %v616 = vsub.f32 %v74, %v615
    %v617 = vand.u32 %v616, 4294901760
    %618 = vmatpush1.msra.mxu0 %v617
    %619 = vmatprep.subr.mxu0 0.0
    %v620 = vand.u32 %v73, 4294901760
    %v621 = vsub.f32 %v73, %v620
    %v622 = vand.u32 %v621, 4294901760
    %623 = vmatpush1.msra.mxu0 %v622
    %624 = vmatprep.subr.mxu0 0.0
    %v625 = vand.u32 %v72, 4294901760
    %v626 = vsub.f32 %v72, %v625
    %v627 = vand.u32 %v626, 4294901760
    %628 = vmatpush1.msra.mxu0 %v627
    %629 = vmatprep.subr.mxu0 0.0
    %v630 = vand.u32 %v71, 4294901760
    %v631 = vsub.f32 %v71, %v630
    %v632 = vand.u32 %v631, 4294901760
    %633 = vmatpush1.msra.mxu0 %v632
    %634 = vmatprep.subr.mxu0 0.0
    %v635 = vand.u32 %v70, 4294901760
    %v636 = vsub.f32 %v70, %v635
    %v637 = vand.u32 %v636, 4294901760
    %638 = vmatpush1.msra.mxu0 %v637
    %639 = vmatprep.subr.mxu0 0.0
    %640 = vmatpush2.msra.mxu0 0.0
    %641 = vmatprep.subr.mxu0 0.0
    %642 = vmatpush2.msra.mxu0 0.0
    %643 = vmatprep.subr.mxu0 0.0
    %644 = vmatpush2.msra.mxu0 0.0
    %645 = vmatprep.subr.mxu0 0.0
    %646 = vmatpush2.msra.mxu0 0.0
    %647 = vmatprep.subr.mxu0 0.0
    %648 = vmatpush2.msra.mxu0 0.0
    %649 = vmatprep.subr.mxu0 0.0
    %650 = vmatpush2.msra.mxu0 0.0
    %651 = vmatprep.subr.mxu0 0.0
    %652 = vmatpush2.msra.mxu0 0.0
    %653 = vmatprep.subr.mxu0 0.0
    %654 = vmatpush2.msra.mxu0 0.0
    %655 = vmatprep.subr.mxu0 0.0
    %656 = vmatpush2.msra.mxu0 0.0
    %657 = vmatprep.subr.mxu0 0.0
    %658 = vmatpush2.msra.mxu0 0.0
    %659 = vmatprep.subr.mxu0 0.0
    %660 = vmatpush2.msra.mxu0 0.0
    %661 = vmatprep.subr.mxu0 0.0
    %662 = vmatpush2.msra.mxu0 0.0
    %663 = vmatprep.subr.mxu0 0.0
    %664 = vmatpush2.msra.mxu0 0.0
    %665 = vmatprep.subr.mxu0 0.0
    %666 = vmatpush2.msra.mxu0 0.0
    %667 = vmatprep.subr.mxu0 0.0
    %668 = vmatpush2.msra.mxu0 0.0
    %669 = vmatprep.subr.mxu0 0.0
    %670 = vmatpush2.msra.mxu0 0.0
    %671 = vmatprep.mubr.f32.mxu0 0.0
    %v672 = vand.u32 %v68, 4294901760
    %673 = vmatmul.mubr.f32.gmra.mxu0 %v672
    %v674 = vpop.f32.mrf.mxu0
    %v675 = vadd.f32 %v548, %v674
    %v676 = vpop.f32.mrf.mxu0
    %677 = vmatprep.mubr.f32.mxu0 0.0
    %v678 = vand.u32 %v69, 4294901760
    %679 = vmatmul.mubr.f32.gmra.mxu0 %v678
    %v680 = vpop.f32.mrf.mxu0
    %v681 = vadd.f32 %v556, %v680
    %v682 = vpop.f32.mrf.mxu0
    %683 = vdwg.mxu0
    %684 = vmatprep.subr.mxu0 0.0
    %v685 = vand.u32 %v85, 4294901760
    %686 = vmatpush1.msra.mxu0 %v685
    %687 = vmatprep.subr.mxu0 0.0
    %v688 = vand.u32 %v84, 4294901760
    %689 = vmatpush1.msra.mxu0 %v688
    %690 = vmatprep.subr.mxu0 0.0
    %v691 = vand.u32 %v83, 4294901760
    %692 = vmatpush1.msra.mxu0 %v691
    %693 = vmatprep.subr.mxu0 0.0
    %v694 = vand.u32 %v82, 4294901760
    %695 = vmatpush1.msra.mxu0 %v694
    %696 = vmatprep.subr.mxu0 0.0
    %v697 = vand.u32 %v81, 4294901760
    %698 = vmatpush1.msra.mxu0 %v697
    %699 = vmatprep.subr.mxu0 0.0
    %v700 = vand.u32 %v80, 4294901760
    %701 = vmatpush1.msra.mxu0 %v700
    %702 = vmatprep.subr.mxu0 0.0
    %v703 = vand.u32 %v79, 4294901760
    %704 = vmatpush1.msra.mxu0 %v703
    %705 = vmatprep.subr.mxu0 0.0
    %v706 = vand.u32 %v78, 4294901760
    %707 = vmatpush1.msra.mxu0 %v706
    %708 = vmatprep.subr.mxu0 0.0
    %v709 = vand.u32 %v77, 4294901760
    %710 = vmatpush1.msra.mxu0 %v709
    %711 = vmatprep.subr.mxu0 0.0
    %v712 = vand.u32 %v76, 4294901760
    %713 = vmatpush1.msra.mxu0 %v712
    %714 = vmatprep.subr.mxu0 0.0
    %v715 = vand.u32 %v75, 4294901760
    %716 = vmatpush1.msra.mxu0 %v715
    %717 = vmatprep.subr.mxu0 0.0
    %v718 = vand.u32 %v74, 4294901760
    %719 = vmatpush1.msra.mxu0 %v718
    %720 = vmatprep.subr.mxu0 0.0
    %v721 = vand.u32 %v73, 4294901760
    %722 = vmatpush1.msra.mxu0 %v721
    %723 = vmatprep.subr.mxu0 0.0
    %v724 = vand.u32 %v72, 4294901760
    %725 = vmatpush1.msra.mxu0 %v724
    %726 = vmatprep.subr.mxu0 0.0
    %v727 = vand.u32 %v71, 4294901760
    %728 = vmatpush1.msra.mxu0 %v727
    %729 = vmatprep.subr.mxu0 0.0
    %v730 = vand.u32 %v70, 4294901760
    %731 = vmatpush1.msra.mxu0 %v730
    %732 = vmatprep.subr.mxu0 0.0
    %733 = vmatpush2.msra.mxu0 0.0
    %734 = vmatprep.subr.mxu0 0.0
    %735 = vmatpush2.msra.mxu0 0.0
    %736 = vmatprep.subr.mxu0 0.0
    %737 = vmatpush2.msra.mxu0 0.0
    %738 = vmatprep.subr.mxu0 0.0
    %739 = vmatpush2.msra.mxu0 0.0
    %740 = vmatprep.subr.mxu0 0.0
    %741 = vmatpush2.msra.mxu0 0.0
    %742 = vmatprep.subr.mxu0 0.0
    %743 = vmatpush2.msra.mxu0 0.0
    %744 = vmatprep.subr.mxu0 0.0
    %745 = vmatpush2.msra.mxu0 0.0
    %746 = vmatprep.subr.mxu0 0.0
    %747 = vmatpush2.msra.mxu0 0.0
    %748 = vmatprep.subr.mxu0 0.0
    %749 = vmatpush2.msra.mxu0 0.0
    %750 = vmatprep.subr.mxu0 0.0
    %751 = vmatpush2.msra.mxu0 0.0
    %752 = vmatprep.subr.mxu0 0.0
    %753 = vmatpush2.msra.mxu0 0.0
    %754 = vmatprep.subr.mxu0 0.0
    %755 = vmatpush2.msra.mxu0 0.0
    %756 = vmatprep.subr.mxu0 0.0
    %757 = vmatpush2.msra.mxu0 0.0
    %758 = vmatprep.subr.mxu0 0.0
    %759 = vmatpush2.msra.mxu0 0.0
    %760 = vmatprep.subr.mxu0 0.0
    %761 = vmatpush2.msra.mxu0 0.0
    %762 = vmatprep.subr.mxu0 0.0
    %763 = vmatpush2.msra.mxu0 0.0
    %764 = vmatprep.mubr.f32.mxu0 0.0
    %v765 = vand.u32 %v68, 4294901760
    %766 = vmatmul.mubr.f32.gmra.mxu0 %v765
    %v767 = vpop.f32.mrf.mxu0
    %v768 = vadd.f32 %v675, %v767
    %v769 = vpop.f32.mrf.mxu0
    %770 = vmatprep.mubr.f32.mxu0 0.0
    %v771 = vand.u32 %v69, 4294901760
    %772 = vmatmul.mubr.f32.gmra.mxu0 %v771
    %v773 = vpop.f32.mrf.mxu0
    %v774 = vadd.f32 %v681, %v773
    %v775 = vpop.f32.mrf.mxu0
    %776 = vdwg.mxu0
    %v777 = vmul.f32 %v768, 0.5
    %v778 = vmul.f32 %v774, 0.5
    %v779 = vmul.f32 %v768, 0.044715
    %v780 = vmul.f32 %v774, 0.044715
    %v781 = vmul.f32 %v779, %v768
    %v782 = vmul.f32 %v780, %v774
    %v783 = vmul.f32 %v781, %v768
    %v784 = vmul.f32 %v782, %v774
    %v785 = vadd.f32 %v768, %v783
    %v786 = vadd.f32 %v774, %v784
    %v787 = vmul.f32 %v785, 0.7978846
    %v788 = vmul.f32 %v786, 0.7978846
    %v789 = vtanh.pop %v787
    %v790 = vtanh.pop %v788
    %v791 = vadd.f32 %v789, 1.0
    %v792 = vadd.f32 %v790, 1.0
    %v793 = vmul.f32 %v777, %v791
    %v794 = vmul.f32 %v778, %v792
    %v795 = vld [vmem:[#allocation8] sm:$0xff]
    %v796 = vld [vmem:[#allocation8 + $0x8] sm:$0xff]
    %v797 = vld [vmem:[#allocation7] sm:$0xff]
    %v798 = vld [vmem:[#allocation7 + $0x8] sm:$0xff]
    %v799 = vld [vmem:[#allocation7 + $0x10] sm:$0xff]
    %v800 = vld [vmem:[#allocation7 + $0x18] sm:$0xff]
    %v801 = vld [vmem:[#allocation7 + $0x20] sm:$0xff]
    %v802 = vld [vmem:[#allocation7 + $0x28] sm:$0xff]
    %v803 = vld [vmem:[#allocation7 + $0x30] sm:$0xff]
    %v804 = vld [vmem:[#allocation7 + $0x38] sm:$0xff]
    %v805 = vld [vmem:[#allocation7 + $0x40] sm:$0xff]
    %v806 = vld [vmem:[#allocation7 + $0x48] sm:$0xff]
    %v807 = vld [vmem:[#allocation7 + $0x50] sm:$0xff]
    %v808 = vld [vmem:[#allocation7 + $0x58] sm:$0xff]
    %v809 = vld [vmem:[#allocation7 + $0x60] sm:$0xff]
    %v810 = vld [vmem:[#allocation7 + $0x68] sm:$0xff]
    %v811 = vld [vmem:[#allocation7 + $0x70] sm:$0xff]
    %v812 = vld [vmem:[#allocation7 + $0x78] sm:$0xff]
    %813 = vmatprep.subr.mxu0 0.0
    %v814 = vand.u32 %v812, 4294901760
    %815 = vmatpush1.msra.mxu0 %v814
    %816 = vmatprep.subr.mxu0 0.0
    %v817 = vand.u32 %v811, 4294901760
    %818 = vmatpush1.msra.mxu0 %v817
    %819 = vmatprep.subr.mxu0 0.0
    %v820 = vand.u32 %v810, 4294901760
    %821 = vmatpush1.msra.mxu0 %v820
    %822 = vmatprep.subr.mxu0 0.0
    %v823 = vand.u32 %v809, 4294901760
    %824 = vmatpush1.msra.mxu0 %v823
    %825 = vmatprep.subr.mxu0 0.0
    %v826 = vand.u32 %v808, 4294901760
    %827 = vmatpush1.msra.mxu0 %v826
    %828 = vmatprep.subr.mxu0 0.0
    %v829 = vand.u32 %v807, 4294901760
    %830 = vmatpush1.msra.mxu0 %v829
    %831 = vmatprep.subr.mxu0 0.0
    %v832 = vand.u32 %v806, 4294901760
    %833 = vmatpush1.msra.mxu0 %v832
    %834 = vmatprep.subr.mxu0 0.0
    %v835 = vand.u32 %v805, 4294901760
    %836 = vmatpush1.msra.mxu0 %v835
    %837 = vmatprep.subr.mxu0 0.0
    %v838 = vand.u32 %v804, 4294901760
    %839 = vmatpush1.msra.mxu0 %v838
    %840 = vmatprep.subr.mxu0 0.0
    %v841 = vand.u32 %v803, 4294901760
    %842 = vmatpush1.msra.mxu0 %v841
    %843 = vmatprep.subr.mxu0 0.0
    %v844 = vand.u32 %v802, 4294901760
    %845 = vmatpush1.msra.mxu0 %v844
    %846 = vmatprep.subr.mxu0 0.0
    %v847 = vand.u32 %v801, 4294901760
    %848 = vmatpush1.msra.mxu0 %v847
    %849 = vmatprep.subr.mxu0 0.0
    %v850 = vand.u32 %v800, 4294901760
    %851 = vmatpush1.msra.mxu0 %v850
    %852 = vmatprep.subr.mxu0 0.0
    %v853 = vand.u32 %v799, 4294901760
    %854 = vmatpush1.msra.mxu0 %v853
    %855 = vmatprep.subr.mxu0 0.0
    %v856 = vand.u32 %v798, 4294901760
    %857 = vmatpush1.msra.mxu0 %v856
    %858 = vmatprep.subr.mxu0 0.0
    %v859 = vand.u32 %v797, 4294901760
    %860 = vmatpush1.msra.mxu0 %v859
    %861 = vmatprep.subr.mxu0 0.0
    %862 = vmatpush2.msra.mxu0 0.0
    %863 = vmatprep.subr.mxu0 0.0
    %864 = vmatpush2.msra.mxu0 0.0
    %865 = vmatprep.subr.mxu0 0.0
    %866 = vmatpush2.msra.mxu0 0.0
    %867 = vmatprep.subr.mxu0 0.0
    %868 = vmatpush2.msra.mxu0 0.0
    %869 = vmatprep.subr.mxu0 0.0
    %870 = vmatpush2.msra.mxu0 0.0
    %871 = vmatprep.subr.mxu0 0.0
    %872 = vmatpush2.msra.mxu0 0.0
    %873 = vmatprep.subr.mxu0 0.0
    %874 = vmatpush2.msra.mxu0 0.0
    %875 = vmatprep.subr.mxu0 0.0
    %876 = vmatpush2.msra.mxu0 0.0
    %877 = vmatprep.subr.mxu0 0.0
    %878 = vmatpush2.msra.mxu0 0.0
    %879 = vmatprep.subr.mxu0 0.0
    %880 = vmatpush2.msra.mxu0 0.0
    %881 = vmatprep.subr.mxu0 0.0
    %882 = vmatpush2.msra.mxu0 0.0
    %883 = vmatprep.subr.mxu0 0.0
    %884 = vmatpush2.msra.mxu0 0.0
    %885 = vmatprep.subr.mxu0 0.0
    %886 = vmatpush2.msra.mxu0 0.0
    %887 = vmatprep.subr.mxu0 0.0
    %888 = vmatpush2.msra.mxu0 0.0
    %889 = vmatprep.subr.mxu0 0.0
    %890 = vmatpush2.msra.mxu0 0.0
    %891 = vmatprep.subr.mxu0 0.0
    %892 = vmatpush2.msra.mxu0 0.0
    %893 = vmatprep.mubr.f32.mxu0 0.0
    %v894 = vand.u32 %v793, 4294901760
    %v895 = vsub.f32 %v793, %v894
    %v896 = vand.u32 %v895, 4294901760
    %v897 = vsub.f32 %v895, %v896
    %v898 = vand.u32 %v897, 4294901760
    %899 = vmatmul.mubr.f32.gmra.mxu0 %v898
    %v900 = vpop.f32.mrf.mxu0
    %v901 = vadd.f32 0.0, %v900
    %v902 = vpop.f32.mrf.mxu0
    %903 = vmatprep.mubr.f32.mxu0 0.0
    %v904 = vand.u32 %v794, 4294901760
    %v905 = vsub.f32 %v794, %v904
    %v906 = vand.u32 %v905, 4294901760
    %v907 = vsub.f32 %v905, %v906
    %v908 = vand.u32 %v907, 4294901760
    %909 = vmatmul.mubr.f32.gmra.mxu0 %v908
    %v910 = vpop.f32.mrf.mxu0
    %v911 = vadd.f32 0.0, %v910
    %v912 = vpop.f32.mrf.mxu0
    %913 = vdwg.mxu0
    %914 = vmatprep.subr.mxu0 0.0
    %v915 = vand.u32 %v812, 4294901760
    %v916 = vsub.f32 %v812, %v915
    %v917 = vand.u32 %v916, 4294901760
    %v918 = vsub.f32 %v916, %v917
    %v919 = vand.u32 %v918, 4294901760
    %920 = vmatpush1.msra.mxu0 %v919
    %921 = vmatprep.subr.mxu0 0.0
    %v922 = vand.u32 %v811, 4294901760
    %v923 = vsub.f32 %v811, %v922
    %v924 = vand.u32 %v923, 4294901760
    %v925 = vsub.f32 %v923, %v924
    %v926 = vand.u32 %v925, 4294901760
    %927 = vmatpush1.msra.mxu0 %v926
    %928 = vmatprep.subr.mxu0 0.0
    %v929 = vand.u32 %v810, 4294901760
    %v930 = vsub.f32 %v810, %v929
    %v931 = vand.u32 %v930, 4294901760
    %v932 = vsub.f32 %v930, %v931
    %v933 = vand.u32 %v932, 4294901760
    %934 = vmatpush1.msra.mxu0 %v933
    %935 = vmatprep.subr.mxu0 0.0
    %v936 = vand.u32 %v809, 4294901760
    %v937 = vsub.f32 %v809, %v936
    %v938 = vand.u32 %v937, 4294901760
    %v939 = vsub.f32 %v937, %v938
    %v940 = vand.u32 %v939, 4294901760
    %941 = vmatpush1.msra.mxu0 %v940
    %942 = vmatprep.subr.mxu0 0.0
    %v943 = vand.u32 %v808, 4294901760
    %v944 = vsub.f32 %v808, %v943
    %v945 = vand.u32 %v944, 4294901760
    %v946 = vsub.f32 %v944, %v945
    %v947 = vand.u32 %v946, 4294901760
    %948 = vmatpush1.msra.mxu0 %v947
    %949 = vmatprep.subr.mxu0 0.0
    %v950 = vand.u32 %v807, 4294901760
    %v951 = vsub.f32 %v807, %v950
    %v952 = vand.u32 %v951, 4294901760
    %v953 = vsub.f32 %v951, %v952
    %v954 = vand.u32 %v953, 4294901760
    %955 = vmatpush1.msra.mxu0 %v954
    %956 = vmatprep.subr.mxu0 0.0
    %v957 = vand.u32 %v806, 4294901760
    %v958 = vsub.f32 %v806, %v957
    %v959 = vand.u32 %v958, 4294901760
    %v960 = vsub.f32 %v958, %v959
    %v961 = vand.u32 %v960, 4294901760
    %962 = vmatpush1.msra.mxu0 %v961
    %963 = vmatprep.subr.mxu0 0.0
    %v964 = vand.u32 %v805, 4294901760
    %v965 = vsub.f32 %v805, %v964
    %v966 = vand.u32 %v965, 4294901760
    %v967 = vsub.f32 %v965, %v966
    %v968 = vand.u32 %v967, 4294901760
    %969 = vmatpush1.msra.mxu0 %v968
    %970 = vmatprep.subr.mxu0 0.0
    %v971 = vand.u32 %v804, 4294901760
    %v972 = vsub.f32 %v804, %v971
    %v973 = vand.u32 %v972, 4294901760
    %v974 = vsub.f32 %v972, %v973
    %v975 = vand.u32 %v974, 4294901760
    %976 = vmatpush1.msra.mxu0 %v975
    %977 = vmatprep.subr.mxu0 0.0
    %v978 = vand.u32 %v803, 4294901760
    %v979 = vsub.f32 %v803, %v978
    %v980 = vand.u32 %v979, 4294901760
    %v981 = vsub.f32 %v979, %v980
    %v982 = vand.u32 %v981, 4294901760
    %983 = vmatpush1.msra.mxu0 %v982
    %984 = vmatprep.subr.mxu0 0.0
    %v985 = vand.u32 %v802, 4294901760
    %v986 = vsub.f32 %v802, %v985
    %v987 = vand.u32 %v986, 4294901760
    %v988 = vsub.f32 %v986, %v987
    %v989 = vand.u32 %v988, 4294901760
    %990 = vmatpush1.msra.mxu0 %v989
    %991 = vmatprep.subr.mxu0 0.0
    %v992 = vand.u32 %v801, 4294901760
    %v993 = vsub.f32 %v801, %v992
    %v994 = vand.u32 %v993, 4294901760
    %v995 = vsub.f32 %v993, %v994
    %v996 = vand.u32 %v995, 4294901760
    %997 = vmatpush1.msra.mxu0 %v996
    %998 = vmatprep.subr.mxu0 0.0
    %v999 = vand.u32 %v800, 4294901760
    %v1000 = vsub.f32 %v800, %v999
    %v1001 = vand.u32 %v1000, 4294901760
    %v1002 = vsub.f32 %v1000, %v1001
    %v1003 = vand.u32 %v1002, 4294901760
    %1004 = vmatpush1.msra.mxu0 %v1003
    %1005 = vmatprep.subr.mxu0 0.0
    %v1006 = vand.u32 %v799, 4294901760
    %v1007 = vsub.f32 %v799, %v1006
    %v1008 = vand.u32 %v1007, 4294901760
    %v1009 = vsub.f32 %v1007, %v1008
    %v1010 = vand.u32 %v1009, 4294901760
    %1011 = vmatpush1.msra.mxu0 %v1010
    %1012 = vmatprep.subr.mxu0 0.0
    %v1013 = vand.u32 %v798, 4294901760
    %v1014 = vsub.f32 %v798, %v1013
    %v1015 = vand.u32 %v1014, 4294901760
    %v1016 = vsub.f32 %v1014, %v1015
    %v1017 = vand.u32 %v1016, 4294901760
    %1018 = vmatpush1.msra.mxu0 %v1017
    %1019 = vmatprep.subr.mxu0 0.0
    %v1020 = vand.u32 %v797, 4294901760
    %v1021 = vsub.f32 %v797, %v1020
    %v1022 = vand.u32 %v1021, 4294901760
    %v1023 = vsub.f32 %v1021, %v1022
    %v1024 = vand.u32 %v1023, 4294901760
    %1025 = vmatpush1.msra.mxu0 %v1024
    %1026 = vmatprep.subr.mxu0 0.0
    %1027 = vmatpush2.msra.mxu0 0.0
    %1028 = vmatprep.subr.mxu0 0.0
    %1029 = vmatpush2.msra.mxu0 0.0
    %1030 = vmatprep.subr.mxu0 0.0
    %1031 = vmatpush2.msra.mxu0 0.0
    %1032 = vmatprep.subr.mxu0 0.0
    %1033 = vmatpush2.msra.mxu0 0.0
    %1034 = vmatprep.subr.mxu0 0.0
    %1035 = vmatpush2.msra.mxu0 0.0
    %1036 = vmatprep.subr.mxu0 0.0
    %1037 = vmatpush2.msra.mxu0 0.0
    %1038 = vmatprep.subr.mxu0 0.0
    %1039 = vmatpush2.msra.mxu0 0.0
    %1040 = vmatprep.subr.mxu0 0.0
    %1041 = vmatpush2.msra.mxu0 0.0
    %1042 = vmatprep.subr.mxu0 0.0
    %1043 = vmatpush2.msra.mxu0 0.0
    %1044 = vmatprep.subr.mxu0 0.0
    %1045 = vmatpush2.msra.mxu0 0.0
    %1046 = vmatprep.subr.mxu0 0.0
    %1047 = vmatpush2.msra.mxu0 0.0
    %1048 = vmatprep.subr.mxu0 0.0
    %1049 = vmatpush2.msra.mxu0 0.0
    %1050 = vmatprep.subr.mxu0 0.0
    %1051 = vmatpush2.msra.mxu0 0.0
    %1052 = vmatprep.subr.mxu0 0.0
    %1053 = vmatpush2.msra.mxu0 0.0
    %1054 = vmatprep.subr.mxu0 0.0
    %1055 = vmatpush2.msra.mxu0 0.0
    %1056 = vmatprep.subr.mxu0 0.0
    %1057 = vmatpush2.msra.mxu0 0.0
    %1058 = vmatprep.mubr.f32.mxu0 0.0
    %v1059 = vand.u32 %v793, 4294901760
    %1060 = vmatmul.mubr.f32.gmra.mxu0 %v1059
    %v1061 = vpop.f32.mrf.mxu0
    %v1062 = vadd.f32 %v901, %v1061
    %v1063 = vpop.f32.mrf.mxu0
    %1064 = vmatprep.mubr.f32.mxu0 0.0
    %v1065 = vand.u32 %v794, 4294901760
    %1066 = vmatmul.mubr.f32.gmra.mxu0 %v1065
    %v1067 = vpop.f32.mrf.mxu0
    %v1068 = vadd.f32 %v911, %v1067
    %v1069 = vpop.f32.mrf.mxu0
    %1070 = vdwg.mxu0
    %1071 = vmatprep.subr.mxu0 0.0
    %v1072 = vand.u32 %v812, 4294901760
    %v1073 = vsub.f32 %v812, %v1072
    %1074 = vmatpush1.msra.mxu0 %v1073
    %1075 = vmatprep.subr.mxu0 0.0
    %v1076 = vand.u32 %v811, 4294901760
    %v1077 = vsub.f32 %v811, %v1076
    %1078 = vmatpush1.msra.mxu0 %v1077
    %1079 = vmatprep.subr.mxu0 0.0
    %v1080 = vand.u32 %v810, 4294901760
    %v1081 = vsub.f32 %v810, %v1080
    %1082 = vmatpush1.msra.mxu0 %v1081
    %1083 = vmatprep.subr.mxu0 0.0
    %v1084 = vand.u32 %v809, 4294901760
    %v1085 = vsub.f32 %v809, %v1084
    %1086 = vmatpush1.msra.mxu0 %v1085
    %1087 = vmatprep.subr.mxu0 0.0
    %v1088 = vand.u32 %v808, 4294901760
    %v1089 = vsub.f32 %v808, %v1088
    %1090 = vmatpush1.msra.mxu0 %v1089
    %1091 = vmatprep.subr.mxu0 0.0
    %v1092 = vand.u32 %v807, 4294901760
    %v1093 = vsub.f32 %v807, %v1092
    %1094 = vmatpush1.msra.mxu0 %v1093
    %1095 = vmatprep.subr.mxu0 0.0
    %v1096 = vand.u32 %v806, 4294901760
    %v1097 = vsub.f32 %v806, %v1096
    %1098 = vmatpush1.msra.mxu0 %v1097
    %1099 = vmatprep.subr.mxu0 0.0
    %v1100 = vand.u32 %v805, 4294901760
    %v1101 = vsub.f32 %v805, %v1100
    %1102 = vmatpush1.msra.mxu0 %v1101
    %1103 = vmatprep.subr.mxu0 0.0
    %v1104 = vand.u32 %v804, 4294901760
    %v1105 = vsub.f32 %v804, %v1104
    %1106 = vmatpush1.msra.mxu0 %v1105
    %1107 = vmatprep.subr.mxu0 0.0
    %v1108 = vand.u32 %v803, 4294901760
    %v1109 = vsub.f32 %v803, %v1108
    %1110 = vmatpush1.msra.mxu0 %v1109
    %1111 = vmatprep.subr.mxu0 0.0
    %v1112 = vand.u32 %v802, 4294901760
    %v1113 = vsub.f32 %v802, %v1112
    %1114 = vmatpush1.msra.mxu0 %v1113
    %1115 = vmatprep.subr.mxu0 0.0
    %v1116 = vand.u32 %v801, 4294901760
    %v1117 = vsub.f32 %v801, %v1116
    %1118 = vmatpush1.msra.mxu0 %v1117
    %1119 = vmatprep.subr.mxu0 0.0
    %v1120 = vand.u32 %v800, 4294901760
    %v1121 = vsub.f32 %v800, %v1120
    %1122 = vmatpush1.msra.mxu0 %v1121
    %1123 = vmatprep.subr.mxu0 0.0
    %v1124 = vand.u32 %v799, 4294901760
    %v1125 = vsub.f32 %v799, %v1124
    %1126 = vmatpush1.msra.mxu0 %v1125
    %1127 = vmatprep.subr.mxu0 0.0
    %v1128 = vand.u32 %v798, 4294901760
    %v1129 = vsub.f32 %v798, %v1128
    %1130 = vmatpush1.msra.mxu0 %v1129
    %1131 = vmatprep.subr.mxu0 0.0
    %v1132 = vand.u32 %v797, 4294901760
    %v1133 = vsub.f32 %v797, %v1132
    %1134 = vmatpush1.msra.mxu0 %v1133
    %1135 = vmatprep.subr.mxu0 0.0
    %1136 = vmatpush2.msra.mxu0 0.0
    %1137 = vmatprep.subr.mxu0 0.0
    %1138 = vmatpush2.msra.mxu0 0.0
    %1139 = vmatprep.subr.mxu0 0.0
    %1140 = vmatpush2.msra.mxu0 0.0
    %1141 = vmatprep.subr.mxu0 0.0
    %1142 = vmatpush2.msra.mxu0 0.0
    %1143 = vmatprep.subr.mxu0 0.0
    %1144 = vmatpush2.msra.mxu0 0.0
    %1145 = vmatprep.subr.mxu0 0.0
    %1146 = vmatpush2.msra.mxu0 0.0
    %1147 = vmatprep.subr.mxu0 0.0
    %1148 = vmatpush2.msra.mxu0 0.0
    %1149 = vmatprep.subr.mxu0 0.0
    %1150 = vmatpush2.msra.mxu0 0.0
    %1151 = vmatprep.subr.mxu0 0.0
    %1152 = vmatpush2.msra.mxu0 0.0
    %1153 = vmatprep.subr.mxu0 0.0
    %1154 = vmatpush2.msra.mxu0 0.0
    %1155 = vmatprep.subr.mxu0 0.0
    %1156 = vmatpush2.msra.mxu0 0.0
    %1157 = vmatprep.subr.mxu0 0.0
    %1158 = vmatpush2.msra.mxu0 0.0
    %1159 = vmatprep.subr.mxu0 0.0
    %1160 = vmatpush2.msra.mxu0 0.0
    %1161 = vmatprep.subr.mxu0 0.0
    %1162 = vmatpush2.msra.mxu0 0.0
    %1163 = vmatprep.subr.mxu0 0.0
    %1164 = vmatpush2.msra.mxu0 0.0
    %1165 = vmatprep.subr.mxu0 0.0
    %1166 = vmatpush2.msra.mxu0 0.0
    %1167 = vmatprep.mubr.f32.mxu0 0.0
    %v1168 = vand.u32 %v793, 4294901760
    %v1169 = vsub.f32 %v793, %v1168
    %1170 = vmatmul.mubr.f32.gmra.mxu0 %v1169
    %v1171 = vpop.f32.mrf.mxu0
    %v1172 = vadd.f32 %v1062, %v1171
    %v1173 = vpop.f32.mrf.mxu0
    %1174 = vmatprep.mubr.f32.mxu0 0.0
    %v1175 = vand.u32 %v794, 4294901760
    %v1176 = vsub.f32 %v794, %v1175
    %1177 = vmatmul.mubr.f32.gmra.mxu0 %v1176
    %v1178 = vpop.f32.mrf.mxu0
    %v1179 = vadd.f32 %v1068, %v1178
    %v1180 = vpop.f32.mrf.mxu0
    %1181 = vdwg.mxu0
    %1182 = vmatprep.subr.mxu0 0.0
    %v1183 = vand.u32 %v812, 4294901760
    %1184 = vmatpush1.msra.mxu0 %v1183
    %1185 = vmatprep.subr.mxu0 0.0
    %v1186 = vand.u32 %v811, 4294901760
    %1187 = vmatpush1.msra.mxu0 %v1186
    %1188 = vmatprep.subr.mxu0 0.0
    %v1189 = vand.u32 %v810, 4294901760
    %1190 = vmatpush1.msra.mxu0 %v1189
    %1191 = vmatprep.subr.mxu0 0.0
    %v1192 = vand.u32 %v809, 4294901760
    %1193 = vmatpush1.msra.mxu0 %v1192
    %1194 = vmatprep.subr.mxu0 0.0
    %v1195 = vand.u32 %v808, 4294901760
    %1196 = vmatpush1.msra.mxu0 %v1195
    %1197 = vmatprep.subr.mxu0 0.0
    %v1198 = vand.u32 %v807, 4294901760
    %1199 = vmatpush1.msra.mxu0 %v1198
    %1200 = vmatprep.subr.mxu0 0.0
    %v1201 = vand.u32 %v806, 4294901760
    %1202 = vmatpush1.msra.mxu0 %v1201
    %1203 = vmatprep.subr.mxu0 0.0
    %v1204 = vand.u32 %v805, 4294901760
    %1205 = vmatpush1.msra.mxu0 %v1204
    %1206 = vmatprep.subr.mxu0 0.0
    %v1207 = vand.u32 %v804, 4294901760
    %1208 = vmatpush1.msra.mxu0 %v1207
    %1209 = vmatprep.subr.mxu0 0.0
    %v1210 = vand.u32 %v803, 4294901760
    %1211 = vmatpush1.msra.mxu0 %v1210
    %1212 = vmatprep.subr.mxu0 0.0
    %v1213 = vand.u32 %v802, 4294901760
    %1214 = vmatpush1.msra.mxu0 %v1213
    %1215 = vmatprep.subr.mxu0 0.0
    %v1216 = vand.u32 %v801, 4294901760
    %1217 = vmatpush1.msra.mxu0 %v1216
    %1218 = vmatprep.subr.mxu0 0.0
    %v1219 = vand.u32 %v800, 4294901760
    %1220 = vmatpush1.msra.mxu0 %v1219
    %1221 = vmatprep.subr.mxu0 0.0
    %v1222 = vand.u32 %v799, 4294901760
    %1223 = vmatpush1.msra.mxu0 %v1222
    %1224 = vmatprep.subr.mxu0 0.0
    %v1225 = vand.u32 %v798, 4294901760
    %1226 = vmatpush1.msra.mxu0 %v1225
    %1227 = vmatprep.subr.mxu0 0.0
    %v1228 = vand.u32 %v797, 4294901760
    %1229 = vmatpush1.msra.mxu0 %v1228
    %1230 = vmatprep.subr.mxu0 0.0
    %1231 = vmatpush2.msra.mxu0 0.0
    %1232 = vmatprep.subr.mxu0 0.0
    %1233 = vmatpush2.msra.mxu0 0.0
    %1234 = vmatprep.subr.mxu0 0.0
    %1235 = vmatpush2.msra.mxu0 0.0
    %1236 = vmatprep.subr.mxu0 0.0
    %1237 = vmatpush2.msra.mxu0 0.0
    %1238 = vmatprep.subr.mxu0 0.0
    %1239 = vmatpush2.msra.mxu0 0.0
    %1240 = vmatprep.subr.mxu0 0.0
    %1241 = vmatpush2.msra.mxu0 0.0
    %1242 = vmatprep.subr.mxu0 0.0
    %1243 = vmatpush2.msra.mxu0 0.0
    %1244 = vmatprep.subr.mxu0 0.0
    %1245 = vmatpush2.msra.mxu0 0.0
    %1246 = vmatprep.subr.mxu0 0.0
    %1247 = vmatpush2.msra.mxu0 0.0
    %1248 = vmatprep.subr.mxu0 0.0
    %1249 = vmatpush2.msra.mxu0 0.0
    %1250 = vmatprep.subr.mxu0 0.0
    %1251 = vmatpush2.msra.mxu0 0.0
    %1252 = vmatprep.subr.mxu0 0.0
    %1253 = vmatpush2.msra.mxu0 0.0
    %1254 = vmatprep.subr.mxu0 0.0
    %1255 = vmatpush2.msra.mxu0 0.0
    %1256 = vmatprep.subr.mxu0 0.0
    %1257 = vmatpush2.msra.mxu0 0.0
    %1258 = vmatprep.subr.mxu0 0.0
    %1259 = vmatpush2.msra.mxu0 0.0
    %1260 = vmatprep.subr.mxu0 0.0
    %1261 = vmatpush2.msra.mxu0 0.0
    %1262 = vmatprep.mubr.f32.mxu0 0.0
    %v1263 = vand.u32 %v793, 4294901760
    %v1264 = vsub.f32 %v793, %v1263
    %v1265 = vand.u32 %v1264, 4294901760
    %1266 = vmatmul.mubr.f32.gmra.mxu0 %v1265
    %v1267 = vpop.f32.mrf.mxu0
    %v1268 = vadd.f32 %v1172, %v1267
    %v1269 = vpop.f32.mrf.mxu0
    %1270 = vmatprep.mubr.f32.mxu0 0.0
    %v1271 = vand.u32 %v794, 4294901760
    %v1272 = vsub.f32 %v794, %v1271
    %v1273 = vand.u32 %v1272, 4294901760
    %1274 = vmatmul.mubr.f32.gmra.mxu0 %v1273
    %v1275 = vpop.f32.mrf.mxu0
    %v1276 = vadd.f32 %v1179, %v1275
    %v1277 = vpop.f32.mrf.mxu0
    %1278 = vdwg.mxu0
    %1279 = vmatprep.subr.mxu0 0.0
    %v1280 = vand.u32 %v812, 4294901760
    %v1281 = vsub.f32 %v812, %v1280
    %v1282 = vand.u32 %v1281, 4294901760
    %1283 = vmatpush1.msra.mxu0 %v1282
    %1284 = vmatprep.subr.mxu0 0.0
    %v1285 = vand.u32 %v811, 4294901760
    %v1286 = vsub.f32 %v811, %v1285
    %v1287 = vand.u32 %v1286, 4294901760
    %1288 = vmatpush1.msra.mxu0 %v1287
    %1289 = vmatprep.subr.mxu0 0.0
    %v1290 = vand.u32 %v810, 4294901760
    %v1291 = vsub.f32 %v810, %v1290
    %v1292 = vand.u32 %v1291, 4294901760
    %1293 = vmatpush1.msra.mxu0 %v1292
    %1294 = vmatprep.subr.mxu0 0.0
    %v1295 = vand.u32 %v809, 4294901760
    %v1296 = vsub.f32 %v809, %v1295
    %v1297 = vand.u32 %v1296, 4294901760
    %1298 = vmatpush1.msra.mxu0 %v1297
    %1299 = vmatprep.subr.mxu0 0.0
    %v1300 = vand.u32 %v808, 4294901760
    %v1301 = vsub.f32 %v808, %v1300
    %v1302 = vand.u32 %v1301, 4294901760
    %1303 = vmatpush1.msra.mxu0 %v1302
    %1304 = vmatprep.subr.mxu0 0.0
    %v1305 = vand.u32 %v807, 4294901760
    %v1306 = vsub.f32 %v807, %v1305
    %v1307 = vand.u32 %v1306, 4294901760
    %1308 = vmatpush1.msra.mxu0 %v1307
    %1309 = vmatprep.subr.mxu0 0.0
    %v1310 = vand.u32 %v806, 4294901760
    %v1311 = vsub.f32 %v806, %v1310
    %v1312 = vand.u32 %v1311, 4294901760
    %1313 = vmatpush1.msra.mxu0 %v1312
    %1314 = vmatprep.subr.mxu0 0.0
    %v1315 = vand.u32 %v805, 4294901760
    %v1316 = vsub.f32 %v805, %v1315
    %v1317 = vand.u32 %v1316, 4294901760
    %1318 = vmatpush1.msra.mxu0 %v1317
    %1319 = vmatprep.subr.mxu0 0.0
    %v1320 = vand.u32 %v804, 4294901760
    %v1321 = vsub.f32 %v804, %v1320
    %v1322 = vand.u32 %v1321, 4294901760
    %1323 = vmatpush1.msra.mxu0 %v1322
    %1324 = vmatprep.subr.mxu0 0.0
    %v1325 = vand.u32 %v803, 4294901760
    %v1326 = vsub.f32 %v803, %v1325
    %v1327 = vand.u32 %v1326, 4294901760
    %1328 = vmatpush1.msra.mxu0 %v1327
    %1329 = vmatprep.subr.mxu0 0.0
    %v1330 = vand.u32 %v802, 4294901760
    %v1331 = vsub.f32 %v802, %v1330
    %v1332 = vand.u32 %v1331, 4294901760
    %1333 = vmatpush1.msra.mxu0 %v1332
    %1334 = vmatprep.subr.mxu0 0.0
    %v1335 = vand.u32 %v801, 4294901760
    %v1336 = vsub.f32 %v801, %v1335
    %v1337 = vand.u32 %v1336, 4294901760
    %1338 = vmatpush1.msra.mxu0 %v1337
    %1339 = vmatprep.subr.mxu0 0.0
    %v1340 = vand.u32 %v800, 4294901760
    %v1341 = vsub.f32 %v800, %v1340
    %v1342 = vand.u32 %v1341, 4294901760
    %1343 = vmatpush1.msra.mxu0 %v1342
    %1344 = vmatprep.subr.mxu0 0.0
    %v1345 = vand.u32 %v799, 4294901760
    %v1346 = vsub.f32 %v799, %v1345
    %v1347 = vand.u32 %v1346, 4294901760
    %1348 = vmatpush1.msra.mxu0 %v1347
    %1349 = vmatprep.subr.mxu0 0.0
    %v1350 = vand.u32 %v798, 4294901760
    %v1351 = vsub.f32 %v798, %v1350
    %v1352 = vand.u32 %v1351, 4294901760
    %1353 = vmatpush1.msra.mxu0 %v1352
    %1354 = vmatprep.subr.mxu0 0.0
    %v1355 = vand.u32 %v797, 4294901760
    %v1356 = vsub.f32 %v797, %v1355
    %v1357 = vand.u32 %v1356, 4294901760
    %1358 = vmatpush1.msra.mxu0 %v1357
    %1359 = vmatprep.subr.mxu0 0.0
    %1360 = vmatpush2.msra.mxu0 0.0
    %1361 = vmatprep.subr.mxu0 0.0
    %1362 = vmatpush2.msra.mxu0 0.0
    %1363 = vmatprep.subr.mxu0 0.0
    %1364 = vmatpush2.msra.mxu0 0.0
    %1365 = vmatprep.subr.mxu0 0.0
    %1366 = vmatpush2.msra.mxu0 0.0
    %1367 = vmatprep.subr.mxu0 0.0
    %1368 = vmatpush2.msra.mxu0 0.0
    %1369 = vmatprep.subr.mxu0 0.0
    %1370 = vmatpush2.msra.mxu0 0.0
    %1371 = vmatprep.subr.mxu0 0.0
    %1372 = vmatpush2.msra.mxu0 0.0
    %1373 = vmatprep.subr.mxu0 0.0
    %1374 = vmatpush2.msra.mxu0 0.0
    %1375 = vmatprep.subr.mxu0 0.0
    %1376 = vmatpush2.msra.mxu0 0.0
    %1377 = vmatprep.subr.mxu0 0.0
    %1378 = vmatpush2.msra.mxu0 0.0
    %1379 = vmatprep.subr.mxu0 0.0
    %1380 = vmatpush2.msra.mxu0 0.0
    %1381 = vmatprep.subr.mxu0 0.0
    %1382 = vmatpush2.msra.mxu0 0.0
    %1383 = vmatprep.subr.mxu0 0.0
    %1384 = vmatpush2.msra.mxu0 0.0
    %1385 = vmatprep.subr.mxu0 0.0
    %1386 = vmatpush2.msra.mxu0 0.0
    %1387 = vmatprep.subr.mxu0 0.0
    %1388 = vmatpush2.msra.mxu0 0.0
    %1389 = vmatprep.subr.mxu0 0.0
    %1390 = vmatpush2.msra.mxu0 0.0
    %1391 = vmatprep.mubr.f32.mxu0 0.0
    %v1392 = vand.u32 %v793, 4294901760
    %1393 = vmatmul.mubr.f32.gmra.mxu0 %v1392
    %v1394 = vpop.f32.mrf.mxu0
    %v1395 = vadd.f32 %v1268, %v1394
    %v1396 = vpop.f32.mrf.mxu0
    %1397 = vmatprep.mubr.f32.mxu0 0.0
    %v1398 = vand.u32 %v794, 4294901760
    %1399 = vmatmul.mubr.f32.gmra.mxu0 %v1398
    %v1400 = vpop.f32.mrf.mxu0
    %v1401 = vadd.f32 %v1276, %v1400
    %v1402 = vpop.f32.mrf.mxu0
    %1403 = vdwg.mxu0
    %1404 = vmatprep.subr.mxu0 0.0
    %v1405 = vand.u32 %v812, 4294901760
    %1406 = vmatpush1.msra.mxu0 %v1405
    %1407 = vmatprep.subr.mxu0 0.0
    %v1408 = vand.u32 %v811, 4294901760
    %1409 = vmatpush1.msra.mxu0 %v1408
    %1410 = vmatprep.subr.mxu0 0.0
    %v1411 = vand.u32 %v810, 4294901760
    %1412 = vmatpush1.msra.mxu0 %v1411
    %1413 = vmatprep.subr.mxu0 0.0
    %v1414 = vand.u32 %v809, 4294901760
    %1415 = vmatpush1.msra.mxu0 %v1414
    %1416 = vmatprep.subr.mxu0 0.0
    %v1417 = vand.u32 %v808, 4294901760
    %1418 = vmatpush1.msra.mxu0 %v1417
    %1419 = vmatprep.subr.mxu0 0.0
    %v1420 = vand.u32 %v807, 4294901760
    %1421 = vmatpush1.msra.mxu0 %v1420
    %1422 = vmatprep.subr.mxu0 0.0
    %v1423 = vand.u32 %v806, 4294901760
    %1424 = vmatpush1.msra.mxu0 %v1423
    %1425 = vmatprep.subr.mxu0 0.0
    %v1426 = vand.u32 %v805, 4294901760
    %1427 = vmatpush1.msra.mxu0 %v1426
    %1428 = vmatprep.subr.mxu0 0.0
    %v1429 = vand.u32 %v804, 4294901760
    %1430 = vmatpush1.msra.mxu0 %v1429
    %1431 = vmatprep.subr.mxu0 0.0
    %v1432 = vand.u32 %v803, 4294901760
    %1433 = vmatpush1.msra.mxu0 %v1432
    %1434 = vmatprep.subr.mxu0 0.0
    %v1435 = vand.u32 %v802, 4294901760
    %1436 = vmatpush1.msra.mxu0 %v1435
    %1437 = vmatprep.subr.mxu0 0.0
    %v1438 = vand.u32 %v801, 4294901760
    %1439 = vmatpush1.msra.mxu0 %v1438
    %1440 = vmatprep.subr.mxu0 0.0
    %v1441 = vand.u32 %v800, 4294901760
    %1442 = vmatpush1.msra.mxu0 %v1441
    %1443 = vmatprep.subr.mxu0 0.0
    %v1444 = vand.u32 %v799, 4294901760
    %1445 = vmatpush1.msra.mxu0 %v1444
    %1446 = vmatprep.subr.mxu0 0.0
    %v1447 = vand.u32 %v798, 4294901760
    %1448 = vmatpush1.msra.mxu0 %v1447
    %1449 = vmatprep.subr.mxu0 0.0
    %v1450 = vand.u32 %v797, 4294901760
    %1451 = vmatpush1.msra.mxu0 %v1450
    %1452 = vmatprep.subr.mxu0 0.0
    %1453 = vmatpush2.msra.mxu0 0.0
    %1454 = vmatprep.subr.mxu0 0.0
    %1455 = vmatpush2.msra.mxu0 0.0
    %1456 = vmatprep.subr.mxu0 0.0
    %1457 = vmatpush2.msra.mxu0 0.0
    %1458 = vmatprep.subr.mxu0 0.0
    %1459 = vmatpush2.msra.mxu0 0.0
    %1460 = vmatprep.subr.mxu0 0.0
    %1461 = vmatpush2.msra.mxu0 0.0
    %1462 = vmatprep.subr.mxu0 0.0
    %1463 = vmatpush2.msra.mxu0 0.0
    %1464 = vmatprep.subr.mxu0 0.0
    %1465 = vmatpush2.msra.mxu0 0.0
    %1466 = vmatprep.subr.mxu0 0.0
    %1467 = vmatpush2.msra.mxu0 0.0
    %1468 = vmatprep.subr.mxu0 0.0
    %1469 = vmatpush2.msra.mxu0 0.0
    %1470 = vmatprep.subr.mxu0 0.0
    %1471 = vmatpush2.msra.mxu0 0.0
    %1472 = vmatprep.subr.mxu0 0.0
    %1473 = vmatpush2.msra.mxu0 0.0
    %1474 = vmatprep.subr.mxu0 0.0
    %1475 = vmatpush2.msra.mxu0 0.0
    %1476 = vmatprep.subr.mxu0 0.0
    %1477 = vmatpush2.msra.mxu0 0.0
    %1478 = vmatprep.subr.mxu0 0.0
    %1479 = vmatpush2.msra.mxu0 0.0
    %1480 = vmatprep.subr.mxu0 0.0
    %1481 = vmatpush2.msra.mxu0 0.0
    %1482 = vmatprep.subr.mxu0 0.0
    %1483 = vmatpush2.msra.mxu0 0.0
    %1484 = vmatprep.mubr.f32.mxu0 0.0
    %v1485 = vand.u32 %v793, 4294901760
    %1486 = vmatmul.mubr.f32.gmra.mxu0 %v1485
    %v1487 = vpop.f32.mrf.mxu0
    %v1488 = vadd.f32 %v1395, %v1487
    %v1489 = vpop.f32.mrf.mxu0
    %1490 = vmatprep.mubr.f32.mxu0 0.0
    %v1491 = vand.u32 %v794, 4294901760
    %1492 = vmatmul.mubr.f32.gmra.mxu0 %v1491
    %v1493 = vpop.f32.mrf.mxu0
    %v1494 = vadd.f32 %v1401, %v1493
    %v1495 = vpop.f32.mrf.mxu0
    %1496 = vdwg.mxu0
    %v1497 = vadd.f32 %v795, %v1488
    %v1498 = vadd.f32 %v796, %v1494
    %1499 = vst [vmem:[#allocation8] sm:$0xff] %v1497
    %1500 = vst [vmem:[#allocation8 + $0x8] sm:$0xff] %v1498
    // Predicated region
    $region38: #{tpu_custom_call.1} parent=1 // pred_check
      %p1501 = pneg %p62
    $region39: #{tpu_custom_call.1} parent=1 // pred_check_branch
      %1503 = sbr.rel (%p1501) target = $region41
    $region40: #{tpu_custom_call.1} parent=1 // pred_region
      %v1504 = vld [vmem:[#allocation8] sm:$0xff]
      %v1505 = vld [vmem:[#allocation8 + $0x8] sm:$0xff]
      %v1506 = vld [vmem:[%s4] sm:$0x1]
      %v1508 = vlaneseq
      %v1509 = vshrl.u32 %v1508, 7
      %v1510 = vsub.s32 0, %v1509
      %v1511 = vrot.slane %v1506, %v1510
      %v1513 = vadd.f32 %v1504, %v1511
      %v1514 = vadd.f32 %v1505, %v1511
      %1515 = vst [vmem:[#allocation8] sm:$0xff] %v1513
      %1516 = vst [vmem:[#allocation8 + $0x8] sm:$0xff] %v1514
    $region41: #{tpu_custom_call.1} parent=1 // pred_fallthru
      _
    // Predicated region
    $region42: #{tpu_custom_call.1} parent=1 // pred_check
      _
    $region43: #{tpu_custom_call.1} parent=1 // pred_check_branch
      %1518 = sbr.rel (0) target = $region45
    $region44: #{tpu_custom_call.1} parent=1 // pred_region
      %s1520 = ssub.s32 256, 256
      %1521 = vsyncadd [#allocation4], %s1520
      %s1522 = sshll.u32 [#allocation8], 4
      %s1523 = int_to_ptr.vmem [resolvable:$true] %s1522
      %1528 = dma.vmem_to_hbm [thread:$0]  %s1523, 256, %s5, [#allocation4], 128, 128, 8
    $region45: #{tpu_custom_call.1} parent=1 // pred_fallthru
      _
    // Predicated region
    $region46: #{tpu_custom_call.1} parent=1 // pred_check
      _
    $region47: #{tpu_custom_call.1} parent=1 // pred_check_branch
      %1530 = sbr.rel (0) target = $region49
    $region48: #{tpu_custom_call.1} parent=1 // pred_region
      %1531 = dma.done [#allocation4], 256
    $region49: #{tpu_custom_call.1} parent=1 // pred_fallthru
      _
    %1532 = vsyncpa [#allocation3], 1
    %1533 = vsyncpa [#allocation6], 1
    %1534 = vsyncpa [#allocation4], 1

</llo_original>
